<compile_context>
chip_gen: v7x
topology: tpu7x:2x2x1
jax: 0.10.0
libtpu: 0.0.40
codegen_flags: <defaults>
</compile_context>

<pallas_src>
import functools

import jax
import jax.numpy as jnp
from jax.experimental import pallas as pl
from jax.experimental.pallas import tpu as pltpu


_VMEM_LIMIT_BYTES = 48 * 1024 * 1024  # safe on v5e/v6e (128 MiB) and v7x (64 MiB physical)


def _block_budget_bytes():
    """Per-generation tile budget (double-buffered => ~2x this resident in VMEM)."""
    kind = ""
    try:
        kind = jax.devices()[0].device_kind.lower()
    except Exception:
        pass
    if ("v5 lite" in kind) or ("v5e" in kind) or ("v5litepod" in kind):
        return 6 * 1024 * 1024          # v5e: smaller scoped-VMEM headroom
    return 8 * 1024 * 1024              # v6e / v7x / default


def _largest_divisor_leq(n, cap):
    cap = max(1, min(n, cap))
    for d in range(cap, 0, -1):
        if n % d == 0:
            return d
    return 1


def _pick_blocks(rows, t, hw, itemsize, budget):
    """Return (row_blk, hw_blk).

    Prefer fully-contiguous blocks: full (rows, T, HW) slab if it fits, else
    split the channel/row axis (contiguous HBM reads/writes at full DMA burst
    size). Only if a single row's (T, HW) plane overflows the budget do we
    split the H*W lane axis (multiples of 128 lanes).
    """
    plane = t * hw * itemsize
    if rows * plane <= budget:
        return rows, hw
    if plane <= budget:
        return _largest_divisor_leq(rows, budget // plane), hw
    hw_blk = max(128, (budget // (t * itemsize)) // 128 * 128)
    return 1, min(hw_blk, hw)


@functools.partial(jax.jit, static_argnames=("num_groups", "eps", "target_block_bytes"))
def aspp_image_pooler(x, w, gamma, beta, *, num_groups=16, eps=1e-5,
                      target_block_bytes=None):
    """Forward of _ASPPImagePooler.

    x:     (B, Cin, T, H, W)
    w:     (Cout, Cin)   -- squeezed 1x1x1 Conv3d weight, bias-free
    gamma: (Cout,)       -- GroupNorm weight
    beta:  (Cout,)       -- GroupNorm bias
    returns (B, Cout, T, H, W)
    """
    B, Cin, T, H, W = x.shape
    Cout = w.shape[0]
    assert Cout % num_groups == 0, "GroupNorm requires Cout % num_groups == 0"
    G = num_groups
    cg = Cout // G
    HW = H * W
    itemsize = jnp.dtype(x.dtype).itemsize
    budget = int(target_block_bytes) if target_block_bytes is not None else _block_budget_bytes()

    # Contiguous (free) reshape: fold H, W into one lane-dense axis.
    x4 = x.reshape(B, Cin, T, HW)

    # ========================== kernel 1 ====================================
    # grid = (B, n_cin, n_hw): accumulate the H*W sum per channel chunk; on the
    # very last step do conv(1x1x1) -> ReLU -> GroupNorm and emit (Cout, T).
    cin_blk, hw_blk1 = _pick_blocks(Cin, T, HW, itemsize, budget)
    n_cin = Cin // cin_blk
    n_hw1 = pl.cdiv(HW, hw_blk1)
    ragged1 = (HW % hw_blk1) != 0
    inv_hw = 1.0 / float(HW)
    inv_n_group = 1.0 / float(cg * T)

    def pool_conv_gn_kernel(x_ref, w_ref, gamma_ref, beta_ref, o_ref, acc_ref):
        c = pl.program_id(1)
        h = pl.program_id(2)

        @pl.when((c == 0) & (h == 0))
        def _init():
            acc_ref[...] = jnp.zeros_like(acc_ref)

        xb = x_ref[...].astype(jnp.float32)            # (cin_blk, T, hw_blk1)

        def _accum(vals):                              # vals: (cin_blk, T)
            if n_cin == 1:
                acc_ref[...] += vals
            else:
                row0 = pl.multiple_of(c * cin_blk, cin_blk)
                acc_ref[pl.ds(row0, cin_blk), :] += vals

        if ragged1:
            # Mask only the final ragged lane tile (keeps the hot path VALU-free).
            @pl.when(h < n_hw1 - 1)
            def _body_full():
                _accum(jnp.sum(xb, axis=-1))

            @pl.when(h == n_hw1 - 1)
            def _body_tail():
                lane = jax.lax.broadcasted_iota(jnp.int32, xb.shape, 2)
                xm = jnp.where(h * hw_blk1 + lane < HW, xb, 0.0)
                _accum(jnp.sum(xm, axis=-1))
        else:
            _accum(jnp.sum(xb, axis=-1))

        @pl.when((c == n_cin - 1) & (h == n_hw1 - 1))
        def _finalize():
            pooled = acc_ref[...] * inv_hw                                   # (Cin, T)
            y = jnp.dot(w_ref[...].astype(jnp.float32), pooled,
                        preferred_element_type=jnp.float32)                  # (Cout, T)
            y = jnp.maximum(y, 0.0)                                          # ReLU

            # GroupNorm(G): stats over (cg channels x T) per group, computed
            # with one-hot group-membership matmuls (no in-kernel reshapes).
            g_r = jax.lax.broadcasted_iota(jnp.int32, (G, Cout), 0)
            c_c = jax.lax.broadcasted_iota(jnp.int32, (G, Cout), 1)
            M = ((c_c >= g_r * cg) & (c_c < (g_r + 1) * cg)).astype(jnp.float32)   # (G, Cout)
            c_r = jax.lax.broadcasted_iota(jnp.int32, (Cout, G), 0)
            g_c = jax.lax.broadcasted_iota(jnp.int32, (Cout, G), 1)
            MT = ((c_r >= g_c * cg) & (c_r < (g_c + 1) * cg)).astype(jnp.float32)  # (Cout, G)

            gsum = jnp.sum(jnp.dot(M, y, preferred_element_type=jnp.float32),
                           axis=-1, keepdims=True)                            # (G, 1)
            gsq = jnp.sum(jnp.dot(M, y * y, preferred_element_type=jnp.float32),
                          axis=-1, keepdims=True)                             # (G, 1)
            mean = gsum * inv_n_group
            var = jnp.maximum(gsq * inv_n_group - mean * mean, 0.0)           # clamp >= 0
            inv_std = jax.lax.rsqrt(var + eps)

            mean_c = jnp.dot(MT, jnp.broadcast_to(mean, (G, T)),
                             preferred_element_type=jnp.float32)              # (Cout, T)
            inv_c = jnp.dot(MT, jnp.broadcast_to(inv_std, (G, T)),
                            preferred_element_type=jnp.float32)               # (Cout, T)

            out = (y - mean_c) * inv_c
            out = out * gamma_ref[...].astype(jnp.float32) + beta_ref[...].astype(jnp.float32)
            o_ref[...] = out.astype(o_ref.dtype)

    # TODO(synk): for v7x with B == 1 the only 'parallel' axis can't feed both
    # TensorCores; a partial-sum split of the reduction would be needed.
    pooled_gn = pl.pallas_call(
        pool_conv_gn_kernel,
        out_shape=jax.ShapeDtypeStruct((B, Cout, T), x.dtype),
        grid_spec=pltpu.PrefetchScalarGridSpec(
            num_scalar_prefetch=0,
            grid=(B, n_cin, n_hw1),
            in_specs=[
                pl.BlockSpec((None, cin_blk, T, hw_blk1), lambda b, c, h: (b, c, 0, h)),
                pl.BlockSpec((Cout, Cin), lambda b, c, h: (0, 0)),
                pl.BlockSpec((Cout, 1), lambda b, c, h: (0, 0)),
                pl.BlockSpec((Cout, 1), lambda b, c, h: (0, 0)),
            ],
            out_specs=pl.BlockSpec((None, Cout, T), lambda b, c, h: (b, 0, 0)),
            scratch_shapes=[pltpu.VMEM((Cin, T), jnp.float32)],
        ),
        compiler_params=pltpu.CompilerParams(
            dimension_semantics=("parallel", "arbitrary", "arbitrary"),
            vmem_limit_bytes=_VMEM_LIMIT_BYTES),
    )(x4, w, gamma.reshape(Cout, 1), beta.reshape(Cout, 1))

    # ========================== kernel 2 ====================================
    # Trilinear upsample (T,1,1)->(T,H,W) with align_corners=True == broadcast
    # over the H*W lane axis (identity over T). Lane-dense, write-only kernel;
    # split Cout (contiguous writes) before ever splitting H*W.
    z4 = pooled_gn.reshape(B, Cout, T, 1)               # trailing-1 metadata reshape
    cout_blk, hw_blk2 = _pick_blocks(Cout, T, HW, itemsize, budget)
    n_cout = Cout // cout_blk
    n_hw2 = pl.cdiv(HW, hw_blk2)

    def broadcast_kernel(z_ref, o_ref):
        o_ref[...] = jnp.broadcast_to(z_ref[...], o_ref.shape).astype(o_ref.dtype)

    out4 = pl.pallas_call(
        broadcast_kernel,
        out_shape=jax.ShapeDtypeStruct((B, Cout, T, HW), x.dtype),
        grid_spec=pltpu.PrefetchScalarGridSpec(
            num_scalar_prefetch=0,
            grid=(B, n_cout, n_hw2),
            in_specs=[pl.BlockSpec((None, cout_blk, T, 1), lambda b, c, h: (b, c, 0, 0))],
            out_specs=pl.BlockSpec((None, cout_blk, T, hw_blk2), lambda b, c, h: (b, c, 0, h)),
        ),
        compiler_params=pltpu.CompilerParams(
            dimension_semantics=("parallel", "parallel", "parallel"),
            vmem_limit_bytes=_VMEM_LIMIT_BYTES),
    )(z4)

    return out4.reshape(B, Cout, T, H, W)               # free contiguous split


def _reference(x, w, gamma, beta, num_groups=16, eps=1e-5):
    """Pure-JAX reference mirroring the PyTorch module."""
    B, Cin, T, H, W = x.shape
    Cout = w.shape[0]
    pooled = jnp.mean(x, axis=(3, 4))                                    # AdaptiveAvgPool3d((None,1,1))
    y = jnp.einsum("oc,bct->bot", w, pooled,
                   precision=jax.lax.Precision.HIGHEST)                  # 1x1x1 Conv3d, bias=False
    y = jnp.maximum(y, 0.0)                                              # ReLU
    cg = Cout // num_groups
    yg = y.reshape(B, num_groups, cg * T)
    mean = yg.mean(axis=-1, keepdims=True)
    var = yg.var(axis=-1, keepdims=True)
    yn = (yg - mean) / jnp.sqrt(var + eps)
    yn = yn.reshape(B, Cout, T) * gamma[None, :, None] + beta[None, :, None]
    # trilinear, align_corners=True from (T,1,1): identity over T, broadcast over H,W
    return jnp.broadcast_to(yn[:, :, :, None, None], (B, Cout, T, H, W))


if __name__ == "__main__":
    key = jax.random.PRNGKey(0)
    kx, kw, kg, kb = jax.random.split(key, 4)

    # GroupNorm(16) requires out_planes % 16 == 0, so Cout = 32.
    B, Cin, Cout, T, H, W = 2, 4, 32, 8, 16, 16
    x = jax.random.normal(kx, (B, Cin, T, H, W), dtype=jnp.float32)
    w = 0.5 * jax.random.normal(kw, (Cout, Cin), dtype=jnp.float32)
    gamma = 1.0 + 0.1 * jax.random.normal(kg, (Cout,), dtype=jnp.float32)
    beta = 0.1 * jax.random.normal(kb, (Cout,), dtype=jnp.float32)

    out = aspp_image_pooler(x, w, gamma, beta)
    out = jax.block_until_ready(out)

    ref = _reference(x, w, gamma, beta)
    assert out.shape == (B, Cout, T, H, W) and out.dtype == x.dtype
    assert jnp.allclose(out, ref, atol=1e-4, rtol=1e-4), float(jnp.max(jnp.abs(out - ref)))

    print("KERNEL_OK")
</pallas_src>

<mosaic_0001>
module attributes {stable_mosaic.version = 11 : i64} {
  func.func @pool_conv_gn_kernel(%arg0: i32, %arg1: i32, %arg2: i32, %arg3: memref<1x4x8x256xf32, #tpu.memory_space<vmem>>, %arg4: memref<32x4xf32, #tpu.memory_space<vmem>>, %arg5: memref<32x1xf32, #tpu.memory_space<vmem>>, %arg6: memref<32x1xf32, #tpu.memory_space<vmem>>, %arg7: memref<1x32x8xf32, #tpu.memory_space<vmem>>, %arg8: memref<4x8xf32, #tpu.memory_space<vmem>>) attributes {dimension_semantics = [#tpu.dimension_semantics<parallel>, #tpu.dimension_semantics<arbitrary>, #tpu.dimension_semantics<arbitrary>], iteration_bounds = array<i64: 2, 1, 1>, scalar_prefetch = 0 : i64, scratch_operands = 1 : i64, tpu.core_type = #tpu.core_type<tc>, window_params = [{transform_indices = @transform_0, window_bounds = array<i64: 1, 4, 8, 256>}, {pipeline_mode = #tpu.pipeline_mode<synchronous>, transform_indices = @transform_1, window_bounds = array<i64: 32, 4>}, {pipeline_mode = #tpu.pipeline_mode<synchronous>, transform_indices = @transform_2, window_bounds = array<i64: 32, 1>}, {pipeline_mode = #tpu.pipeline_mode<synchronous>, transform_indices = @transform_3, window_bounds = array<i64: 32, 1>}, {transform_indices = @transform_4, window_bounds = array<i64: 1, 32, 8>}]} {
    %c0_i32 = arith.constant 0 : i32
    %0 = arith.cmpi eq, %arg1, %c0_i32 : i32
    %c0_i32_0 = arith.constant 0 : i32
    %1 = arith.cmpi eq, %arg2, %c0_i32_0 : i32
    %2 = arith.andi %0, %1 : i1
    %3 = arith.extui %2 : i1 to i32
    %c0_i32_1 = arith.constant 0 : i32
    %4 = arith.cmpi ne, %3, %c0_i32_1 : i32
    scf.if %4 {
      %cst_12 = arith.constant 0.000000e+00 : f32
      %16 = vector.broadcast %cst_12 : f32 to vector<4x8xf32>
      %c0_13 = arith.constant 0 : index
      %c0_14 = arith.constant 0 : index
      %17 = vector.load %arg8[%c0_13, %c0_14] : memref<4x8xf32, #tpu.memory_space<vmem>>, vector<4x8xf32>
      tpu.vector_store %arg8[%c0_13, %c0_14], %16 {strides = array<i32>} : memref<4x8xf32, #tpu.memory_space<vmem>>, vector<4x8xf32>,
    } else {
    }
    %c0 = arith.constant 0 : index
    %c0_2 = arith.constant 0 : index
    %c0_3 = arith.constant 0 : index
    %c0_4 = arith.constant 0 : index
    %5 = vector.load %arg3[%c0, %c0_2, %c0_3, %c0_4] : memref<1x4x8x256xf32, #tpu.memory_space<vmem>>, vector<1x4x8x256xf32>
    %6 = vector.shape_cast %5 : vector<1x4x8x256xf32> to vector<4x8x256xf32>
    %cst = arith.constant dense<0.000000e+00> : vector<4x8xf32>
    %7 = vector.multi_reduction <add>, %6, %cst [2] : vector<4x8x256xf32> to vector<4x8xf32>
    %c0_5 = arith.constant 0 : index
    %c0_6 = arith.constant 0 : index
    %8 = vector.load %arg8[%c0_5, %c0_6] : memref<4x8xf32, #tpu.memory_space<vmem>>, vector<4x8xf32>
    %9 = arith.addf %8, %7 : vector<4x8xf32>
    %c0_7 = arith.constant 0 : index
    %c0_8 = arith.constant 0 : index
    %10 = vector.load %arg8[%c0_7, %c0_8] : memref<4x8xf32, #tpu.memory_space<vmem>>, vector<4x8xf32>
    tpu.vector_store %arg8[%c0_7, %c0_8], %9 {strides = array<i32>} : memref<4x8xf32, #tpu.memory_space<vmem>>, vector<4x8xf32>,
    %c0_i32_9 = arith.constant 0 : i32
    %11 = arith.cmpi eq, %arg1, %c0_i32_9 : i32
    %c0_i32_10 = arith.constant 0 : i32
    %12 = arith.cmpi eq, %arg2, %c0_i32_10 : i32
    %13 = arith.andi %11, %12 : i1
    %14 = arith.extui %13 : i1 to i32
    %c0_i32_11 = arith.constant 0 : i32
    %15 = arith.cmpi ne, %14, %c0_i32_11 : i32
    scf.if %15 {
      %c0_12 = arith.constant 0 : index
      %c0_13 = arith.constant 0 : index
      %16 = vector.load %arg8[%c0_12, %c0_13] : memref<4x8xf32, #tpu.memory_space<vmem>>, vector<4x8xf32>
      %cst_14 = arith.constant 3.906250e-03 : f32
      %17 = vector.broadcast %cst_14 : f32 to vector<4x8xf32>
      %18 = arith.mulf %16, %17 : vector<4x8xf32>
      %c0_15 = arith.constant 0 : index
      %c0_16 = arith.constant 0 : index
      %19 = vector.load %arg4[%c0_15, %c0_16] : memref<32x4xf32, #tpu.memory_space<vmem>>, vector<32x4xf32>
      %cst_17 = arith.constant dense<0.000000e+00> : vector<32x8xf32>
      %20 = tpu.matmul %19, %18, %cst_17 {dimension_numbers = #tpu.dot_dimension_numbers<[1], [0], [0], [1], [0, 0, 1, 1], [], []>} : vector<32x4xf32>, vector<4x8xf32>, vector<32x8xf32> -> vector<32x8xf32>
      %cst_18 = arith.constant 0.000000e+00 : f32
      %21 = vector.broadcast %cst_18 : f32 to vector<32x8xf32>
      %22 = arith.maximumf %20, %21 : vector<32x8xf32>
      %23 = tpu.iota {dimensions = array<i32: 0>} : vector<16x32xi32>
      %24 = tpu.iota {dimensions = array<i32: 1>} : vector<16x32xi32>
      %c2_i32 = arith.constant 2 : i32
      %25 = vector.broadcast %c2_i32 : i32 to vector<16x32xi32>
      %26 = arith.muli %23, %25 : vector<16x32xi32>
      %27 = arith.cmpi sge, %24, %26 : vector<16x32xi32>
      %c1_i32 = arith.constant 1 : i32
      %28 = vector.broadcast %c1_i32 : i32 to vector<16x32xi32>
      %29 = arith.addi %23, %28 : vector<16x32xi32>
      %c2_i32_19 = arith.constant 2 : i32
      %30 = vector.broadcast %c2_i32_19 : i32 to vector<16x32xi32>
      %31 = arith.muli %29, %30 : vector<16x32xi32>
      %32 = arith.cmpi slt, %24, %31 : vector<16x32xi32>
      %33 = arith.andi %27, %32 : vector<16x32xi1>
      %34 = arith.extui %33 : vector<16x32xi1> to vector<16x32xi32>
      %35 = arith.sitofp %34 : vector<16x32xi32> to vector<16x32xf32>
      %36 = tpu.iota {dimensions = array<i32: 0>} : vector<32x16xi32>
      %37 = tpu.iota {dimensions = array<i32: 1>} : vector<32x16xi32>
      %c2_i32_20 = arith.constant 2 : i32
      %38 = vector.broadcast %c2_i32_20 : i32 to vector<32x16xi32>
      %39 = arith.muli %37, %38 : vector<32x16xi32>
      %40 = arith.cmpi sge, %36, %39 : vector<32x16xi32>
      %c1_i32_21 = arith.constant 1 : i32
      %41 = vector.broadcast %c1_i32_21 : i32 to vector<32x16xi32>
      %42 = arith.addi %37, %41 : vector<32x16xi32>
      %c2_i32_22 = arith.constant 2 : i32
      %43 = vector.broadcast %c2_i32_22 : i32 to vector<32x16xi32>
      %44 = arith.muli %42, %43 : vector<32x16xi32>
      %45 = arith.cmpi slt, %36, %44 : vector<32x16xi32>
      %46 = arith.andi %40, %45 : vector<32x16xi1>
      %47 = arith.extui %46 : vector<32x16xi1> to vector<32x16xi32>
      %48 = arith.sitofp %47 : vector<32x16xi32> to vector<32x16xf32>
      %cst_23 = arith.constant dense<0.000000e+00> : vector<16x8xf32>
      %49 = tpu.matmul %35, %22, %cst_23 {dimension_numbers = #tpu.dot_dimension_numbers<[1], [0], [0], [1], [0, 0, 1, 1], [], []>} : vector<16x32xf32>, vector<32x8xf32>, vector<16x8xf32> -> vector<16x8xf32>
      %cst_24 = arith.constant dense<0.000000e+00> : vector<16xf32>
      %50 = vector.multi_reduction <add>, %49, %cst_24 [1] : vector<16x8xf32> to vector<16xf32>
      %51 = vector.shape_cast %50 : vector<16xf32> to vector<16x1xf32>
      %52 = arith.mulf %22, %22 : vector<32x8xf32>
      %cst_25 = arith.constant dense<0.000000e+00> : vector<16x8xf32>
      %53 = tpu.matmul %35, %52, %cst_25 {dimension_numbers = #tpu.dot_dimension_numbers<[1], [0], [0], [1], [0, 0, 1, 1], [], []>} : vector<16x32xf32>, vector<32x8xf32>, vector<16x8xf32> -> vector<16x8xf32>
      %cst_26 = arith.constant dense<0.000000e+00> : vector<16xf32>
      %54 = vector.multi_reduction <add>, %53, %cst_26 [1] : vector<16x8xf32> to vector<16xf32>
      %55 = vector.shape_cast %54 : vector<16xf32> to vector<16x1xf32>
      %cst_27 = arith.constant 6.250000e-02 : f32
      %56 = vector.broadcast %cst_27 : f32 to vector<16x1xf32>
      %57 = arith.mulf %51, %56 : vector<16x1xf32>
      %cst_28 = arith.constant 6.250000e-02 : f32
      %58 = vector.broadcast %cst_28 : f32 to vector<16x1xf32>
      %59 = arith.mulf %55, %58 : vector<16x1xf32>
      %60 = arith.mulf %57, %57 : vector<16x1xf32>
      %61 = arith.subf %59, %60 : vector<16x1xf32>
      %cst_29 = arith.constant 0.000000e+00 : f32
      %62 = vector.broadcast %cst_29 : f32 to vector<16x1xf32>
      %63 = arith.maximumf %61, %62 : vector<16x1xf32>
      %cst_30 = arith.constant 9.99999974E-6 : f32
      %64 = vector.broadcast %cst_30 : f32 to vector<16x1xf32>
      %65 = arith.addf %63, %64 : vector<16x1xf32>
      %66 = math.rsqrt %65 : vector<16x1xf32>
      %67 = vector.shape_cast %57 : vector<16x1xf32> to vector<16x1xf32>
      %68 = vector.broadcast %67 : vector<16x1xf32> to vector<16x8xf32>
      %cst_31 = arith.constant dense<0.000000e+00> : vector<32x8xf32>
      %69 = tpu.matmul %48, %68, %cst_31 {dimension_numbers = #tpu.dot_dimension_numbers<[1], [0], [0], [1], [0, 0, 1, 1], [], []>} : vector<32x16xf32>, vector<16x8xf32>, vector<32x8xf32> -> vector<32x8xf32>
      %70 = vector.shape_cast %66 : vector<16x1xf32> to vector<16x1xf32>
      %71 = vector.broadcast %70 : vector<16x1xf32> to vector<16x8xf32>
      %cst_32 = arith.constant dense<0.000000e+00> : vector<32x8xf32>
      %72 = tpu.matmul %48, %71, %cst_32 {dimension_numbers = #tpu.dot_dimension_numbers<[1], [0], [0], [1], [0, 0, 1, 1], [], []>} : vector<32x16xf32>, vector<16x8xf32>, vector<32x8xf32> -> vector<32x8xf32>
      %73 = arith.subf %22, %69 : vector<32x8xf32>
      %74 = arith.mulf %73, %72 : vector<32x8xf32>
      %c0_33 = arith.constant 0 : index
      %c0_34 = arith.constant 0 : index
      %75 = vector.load %arg5[%c0_33, %c0_34] : memref<32x1xf32, #tpu.memory_space<vmem>>, vector<32x1xf32>
      %76 = vector.broadcast %75 : vector<32x1xf32> to vector<32x8xf32>
      %77 = arith.mulf %74, %76 : vector<32x8xf32>
      %c0_35 = arith.constant 0 : index
      %c0_36 = arith.constant 0 : index
      %78 = vector.load %arg6[%c0_35, %c0_36] : memref<32x1xf32, #tpu.memory_space<vmem>>, vector<32x1xf32>
      %79 = vector.broadcast %78 : vector<32x1xf32> to vector<32x8xf32>
      %80 = arith.addf %77, %79 : vector<32x8xf32>
      %c0_37 = arith.constant 0 : index
      %c0_38 = arith.constant 0 : index
      %c0_39 = arith.constant 0 : index
      %81 = vector.load %arg7[%c0_37, %c0_38, %c0_39] : memref<1x32x8xf32, #tpu.memory_space<vmem>>, vector<1x32x8xf32>
      %82 = vector.shape_cast %81 : vector<1x32x8xf32> to vector<32x8xf32>
      %83 = vector.shape_cast %80 : vector<32x8xf32> to vector<1x32x8xf32>
      tpu.vector_store %arg7[%c0_37, %c0_38, %c0_39], %83 {strides = array<i32>} : memref<1x32x8xf32, #tpu.memory_space<vmem>>, vector<1x32x8xf32>,
    } else {
    }
    return
  }
  func.func @transform_0(%arg0: i32, %arg1: i32, %arg2: i32) -> (i32, i32, i32, i32) {
    %c0_i32 = arith.constant 0 : i32
    %c0_i32_0 = arith.constant 0 : i32
    return %arg0, %arg1, %c0_i32, %arg2 : i32, i32, i32, i32
  }
  func.func @transform_1(%arg0: i32, %arg1: i32, %arg2: i32) -> (i32, i32) {
    %c0_i32 = arith.constant 0 : i32
    %c0_i32_0 = arith.constant 0 : i32
    %c0_i32_1 = arith.constant 0 : i32
    return %c0_i32, %c0_i32_0 : i32, i32
  }
  func.func @transform_2(%arg0: i32, %arg1: i32, %arg2: i32) -> (i32, i32) {
    %c0_i32 = arith.constant 0 : i32
    %c0_i32_0 = arith.constant 0 : i32
    %c0_i32_1 = arith.constant 0 : i32
    return %c0_i32, %c0_i32_0 : i32, i32
  }
  func.func @transform_3(%arg0: i32, %arg1: i32, %arg2: i32) -> (i32, i32) {
    %c0_i32 = arith.constant 0 : i32
    %c0_i32_0 = arith.constant 0 : i32
    %c0_i32_1 = arith.constant 0 : i32
    return %c0_i32, %c0_i32_0 : i32, i32
  }
  func.func @transform_4(%arg0: i32, %arg1: i32, %arg2: i32) -> (i32, i32, i32) {
    %c0_i32 = arith.constant 0 : i32
    %c0_i32_0 = arith.constant 0 : i32
    %c0_i32_1 = arith.constant 0 : i32
    return %arg0, %c0_i32, %c0_i32_0 : i32, i32, i32
  }
}

module attributes {stable_mosaic.version = 11 : i64} {
  func.func @broadcast_kernel(%arg0: i32, %arg1: i32, %arg2: i32, %arg3: memref<1x32x8x1xf32, #tpu.memory_space<vmem>>, %arg4: memref<1x32x8x256xf32, #tpu.memory_space<vmem>>) attributes {dimension_semantics = [#tpu.dimension_semantics<parallel>, #tpu.dimension_semantics<parallel>, #tpu.dimension_semantics<parallel>], iteration_bounds = array<i64: 2, 1, 1>, scalar_prefetch = 0 : i64, scratch_operands = 0 : i64, tpu.core_type = #tpu.core_type<tc>, window_params = [{transform_indices = @transform_0, window_bounds = array<i64: 1, 32, 8, 1>}, {transform_indices = @transform_1, window_bounds = array<i64: 1, 32, 8, 256>}]} {
    %c0 = arith.constant 0 : index
    %c0_0 = arith.constant 0 : index
    %c0_1 = arith.constant 0 : index
    %c0_2 = arith.constant 0 : index
    %0 = vector.load %arg3[%c0, %c0_0, %c0_1, %c0_2] : memref<1x32x8x1xf32, #tpu.memory_space<vmem>>, vector<1x32x8x1xf32>
    %1 = vector.shape_cast %0 : vector<1x32x8x1xf32> to vector<32x8x1xf32>
    %2 = vector.shape_cast %1 : vector<32x8x1xf32> to vector<32x8x1xf32>
    %3 = vector.broadcast %2 : vector<32x8x1xf32> to vector<32x8x256xf32>
    %c0_3 = arith.constant 0 : index
    %c0_4 = arith.constant 0 : index
    %c0_5 = arith.constant 0 : index
    %c0_6 = arith.constant 0 : index
    %4 = vector.load %arg4[%c0_3, %c0_4, %c0_5, %c0_6] : memref<1x32x8x256xf32, #tpu.memory_space<vmem>>, vector<1x32x8x256xf32>
    %5 = vector.shape_cast %4 : vector<1x32x8x256xf32> to vector<32x8x256xf32>
    %6 = vector.shape_cast %3 : vector<32x8x256xf32> to vector<1x32x8x256xf32>
    tpu.vector_store %arg4[%c0_3, %c0_4, %c0_5, %c0_6], %6 {strides = array<i32>} : memref<1x32x8x256xf32, #tpu.memory_space<vmem>>, vector<1x32x8x256xf32>,
    return
  }
  func.func @transform_0(%arg0: i32, %arg1: i32, %arg2: i32) -> (i32, i32, i32, i32) {
    %c0_i32 = arith.constant 0 : i32
    %c0_i32_0 = arith.constant 0 : i32
    %c0_i32_1 = arith.constant 0 : i32
    return %arg0, %arg1, %c0_i32, %c0_i32_0 : i32, i32, i32, i32
  }
  func.func @transform_1(%arg0: i32, %arg1: i32, %arg2: i32) -> (i32, i32, i32, i32) {
    %c0_i32 = arith.constant 0 : i32
    %c0_i32_0 = arith.constant 0 : i32
    return %arg0, %arg1, %c0_i32, %arg2 : i32, i32, i32, i32
  }
}

</mosaic_0001>

<llo_original>
// kernel: aspp_image_pooler.3
$region0: #{aspp_image_pooler.3}
  #allocation0 [shape = 'u32[]', space=smem, size = 0x4, offset = 0x4, fixed_abs, tag = 'smem constant byte address 0x4 - core index']
  #allocation1 [shape = 'u32[144,128]{1,0:T(1,128)}', space=vmem, size = 0x12000, scoped, tag = 'internal scratch']
  %s0 = inlined_call_operand.vmem [shape: f32[2,32,8,1], index: 0, kind: input, shape index: {}]
  %s1 = inlined_call_operand.vmem [shape: f32[2,32,8,256], index: 1, kind: output, shape index: {}]
  %s2 = sld [smem:[#allocation0]]
  $region37: #{aspp_image_pooler.3} parent=0
    _
  %s4 = ssub.s32 1, %s2
  %s5 = scalar_select 0, %s4, %s2
  loop: start=0, step=1, limit=4
  $region2: #{aspp_image_pooler.3} parent=0 // loop_pre_header
    _
  $region3: #{aspp_image_pooler.3} parent=0 // loop_header
    %s7 = sphi 0, %s11
    %p8 = scmp.ge.s32.totalorder %s7, 4
    %s14 = sphi 0, %s33
    %s15 = sphi 0, %s29
    %s16 = sphi 0, %s25
    %s17 = sphi 0, %s14
    %s18 = sphi 0, %s15
    %s19 = sphi 0, %s16
    %s20 = sphi 0, %s17
    %s21 = sphi 0, %s18
    %s22 = sphi 0, %s19
    %s38 = sphi 0, %s40
    %s41 = sphi 0, %s38
    %s42 = sphi 0, %s41
    %s58 = sphi 0, %s42
    %s68 = sphi 0, %s70
    %s71 = sphi 0, %s68
    %s72 = sphi 0, %s71
    %s88 = sphi 0, %s72
  $region4: #{aspp_image_pooler.3} parent=0 // loop_header_branch
    %10 = sbr.rel (%p8) target = $region8
  $region5: #{aspp_image_pooler.3} parent=0 // loop_body
    %s12 = ssub.s32 %s7, 1
    %s13 = ssub.s32 %s7, 2
    %s23 = sadd.s32 1, %s16
    %p24 = scmp.ge.s32.totalorder %s23, 1
    %s25 = scalar_select %p24, 0, %s23
    %s26 = sadd.s32 1, %s15
    %s27 = scalar_select %p24, %s26, %s15
    %p28 = scmp.ge.s32.totalorder %s27, 1
    %s29 = scalar_select %p28, 0, %s27
    %s30 = sadd.s32 1, %s14
    %s31 = scalar_select %p28, %s30, %s14
    %p32 = scmp.ge.s32.totalorder %s31, 2
    %s33 = scalar_select %p32, 0, %s31
    %s34 = ssub.s32 %s14, %s33
    %s35 = ssub.s32 %s15, %s29
    %s36 = sor.u32 %s34, %s35
    %p37 = scmp.eq.s32.totalorder %s36, 0
    %s39 = sadd.s32 %s38, 1
    %s40 = scalar_select %p37, %s38, %s39
    %p43 = pneg %p37
    %p44 = scmp.eq.s32.totalorder %s7, 1
    %p45 = por %p43, %p44
    %p46 = scmp.ne.s32.totalorder %s38, %s41
    %p47 = scmp.eq.s32.totalorder %s7, 0
    %p48 = por %p46, %p47
    %p49 = scmp.ne.s32.totalorder %s38, %s41
    %p50 = scmp.eq.s32.totalorder %s12, 1
    %p51 = por %p49, %p50
    %p52 = scmp.ne.s32.totalorder %s41, %s42
    %p53 = scmp.eq.s32.totalorder %s12, 0
    %p54 = por %p52, %p53
    %p55 = scmp.ne.s32.totalorder %s41, %s42
    %p56 = scmp.eq.s32.totalorder %s13, 1
    %p57 = por %p55, %p56
    %p59 = scmp.ne.s32.totalorder %s42, %s58
    %p60 = scmp.eq.s32.totalorder %s13, 0
    %p61 = por %p59, %p60
    %s62 = ssub.s32 %s14, %s33
    %s63 = ssub.s32 %s15, %s29
    %s64 = sor.u32 %s62, %s63
    %s65 = ssub.s32 %s16, %s25
    %s66 = sor.u32 %s64, %s65
    %p67 = scmp.eq.s32.totalorder %s66, 0
    %s69 = sadd.s32 %s68, 1
    %s70 = scalar_select %p67, %s68, %s69
    %p73 = pneg %p67
    %p74 = scmp.eq.s32.totalorder %s7, 1
    %p75 = por %p73, %p74
    %p76 = scmp.ne.s32.totalorder %s68, %s71
    %p77 = scmp.eq.s32.totalorder %s7, 0
    %p78 = por %p76, %p77
    %p79 = scmp.ne.s32.totalorder %s68, %s71
    %p80 = scmp.eq.s32.totalorder %s12, 1
    %p81 = por %p79, %p80
    %p82 = scmp.ne.s32.totalorder %s71, %s72
    %p83 = scmp.eq.s32.totalorder %s12, 0
    %p84 = por %p82, %p83
    %p85 = scmp.ne.s32.totalorder %s71, %s72
    %p86 = scmp.eq.s32.totalorder %s13, 1
    %p87 = por %p85, %p86
    %p89 = scmp.ne.s32.totalorder %s72, %s88
    %p90 = scmp.eq.s32.totalorder %s13, 0
    %p91 = por %p89, %p90
    %p92 = scmp.le.s32.totalorder 1, %s7
    %p93 = scmp.lt.s32.totalorder %s7, 3
    %p94 = pnand %p92, %p93
    %p95 = pneg %p94
    // Predicated region
    $region9: #{aspp_image_pooler.3} parent=5 // pred_check
      _
    $region10: #{aspp_image_pooler.3} parent=5 // pred_check_branch
      %97 = sbr.rel (%p94) target = $region12
    $region11: #{aspp_image_pooler.3} parent=5 // pred_region
      %s98 = ssub.s32 %s7, 1
    $region12: #{aspp_image_pooler.3} parent=5 // pred_fallthru
      _
    %p99 = scmp.lt.s32.totalorder %s7, 2
    // Predicated region
    $region13: #{aspp_image_pooler.3} parent=5 // pred_check
      %p100 = pneg %p99
    $region14: #{aspp_image_pooler.3} parent=5 // pred_check_branch
      %102 = sbr.rel (%p100) target = $region16
    $region15: #{aspp_image_pooler.3} parent=5 // pred_region
      // Predicated region
      $region17: #{aspp_image_pooler.3} parent=15 // pred_check
        %p103 = pneg %p48
      $region18: #{aspp_image_pooler.3} parent=15 // pred_check_branch
        %105 = sbr.rel (%p103) target = $region20
      $region19: #{aspp_image_pooler.3} parent=15 // pred_region
        %s106 = smul.u32 32, %s15
        %p107 = scmp.lt.s32.totalorder %s14, 1
        %s108 = scalar_select %p107, %s14, 1
        %p109 = scmp.lt.s32.totalorder %s106, 31
        %s110 = scalar_select %p109, %s106, 31
        %s111 = smul.addr %s108, 32
        %s112 = sadd.s32 %s110, %s111
        %s113 = smul.addr %s112, 8
        %s114 = scalar_lea.vmem %s0, %s113
        %s115 = smul.u32 32, %s15
      $region20: #{aspp_image_pooler.3} parent=15 // pred_fallthru
        _
    $region16: #{aspp_image_pooler.3} parent=5 // pred_fallthru
      _
    %p116 = scmp.le.s32.totalorder 1, %s7
    %p117 = scmp.lt.s32.totalorder %s7, 3
    %p118 = pnand %p116, %p117
    %p119 = pneg %p118
    // Predicated region
    $region21: #{aspp_image_pooler.3} parent=5 // pred_check
      _
    $region22: #{aspp_image_pooler.3} parent=5 // pred_check_branch
      %121 = sbr.rel (%p118) target = $region24
    $region23: #{aspp_image_pooler.3} parent=5 // pred_region
      %s122 = ssub.s32 %s7, 1
      %s123 = smul.u32 32, %s18
      %p124 = scmp.lt.s32.totalorder %s17, 1
      %s125 = scalar_select %p124, %s17, 1
      %p126 = scmp.lt.s32.totalorder %s123, 31
      %s127 = scalar_select %p126, %s123, 31
      %s128 = smul.addr %s125, 32
      %s129 = sadd.s32 %s127, %s128
      %s130 = smul.addr %s129, 8
      %s131 = scalar_lea.vmem %s0, %s130
      %p132 = pneg %p54
      %p133 = pneg %p51
      %p134 = pneg %p84
      %p135 = pneg %p81
      %s136 = smul.u32 32, %s18
      %s137 = smul.u32 2, %s19
      %p138 = scmp.lt.s32.totalorder %s17, 1
      %s139 = scalar_select %p138, %s17, 1
      %p140 = scmp.lt.s32.totalorder %s136, 31
      %s141 = scalar_select %p140, %s136, 31
      %p142 = scmp.lt.s32.totalorder %s137, 1
      %s143 = scalar_select %p142, %s137, 1
      %s144 = smul.addr %s141, 2
      %s145 = sadd.s32 %s143, %s144
      %s146 = smul.addr %s139, 64
      %s147 = sadd.s32 %s145, %s146
      %s148 = smul.addr %s147, 8
      %s149 = scalar_lea.vmem %s1, %s148
      %s150 = smul.u32 32, %s18
      %p151 = scmp.lt.s32.totalorder %s17, 1
      %s152 = scalar_select %p151, %s17, 1
      %p153 = scmp.lt.s32.totalorder %s150, 31
      %s154 = scalar_select %p153, %s150, 31
      %s155 = smul.addr %s152, 32
      %s156 = sadd.s32 %s154, %s155
      %s157 = smul.addr %s156, 8
      %s158 = scalar_lea.vmem %s0, %s157
      %s159 = smul.u32 32, %s18
      %s160 = smul.u32 32, %s18
      %s161 = smul.u32 2, %s19
      %p162 = scmp.lt.s32.totalorder %s17, 1
      %s163 = scalar_select %p162, %s17, 1
      %p164 = scmp.lt.s32.totalorder %s160, 31
      %s165 = scalar_select %p164, %s160, 31
      %p166 = scmp.lt.s32.totalorder %s161, 1
      %s167 = scalar_select %p166, %s161, 1
      %s168 = smul.addr %s165, 2
      %s169 = sadd.s32 %s167, %s168
      %s170 = smul.addr %s163, 64
      %s171 = sadd.s32 %s169, %s170
      %s172 = smul.addr %s171, 8
      %s173 = scalar_lea.vmem %s1, %s172
      %s174 = smul.u32 32, %s18
      %s175 = smul.u32 2, %s19
      %v176 = vld [vmem:[%s158] sm:$0xff]
      %v177 = vld [vmem:[%s158 + $0x8] sm:$0xff]
      %v178 = vld [vmem:[%s158 + $0x10] sm:$0xff]
      %v179 = vld [vmem:[%s158 + $0x18] sm:$0xff]
      %v180 = vld [vmem:[%s158 + $0x20] sm:$0xff]
      %v181 = vld [vmem:[%s158 + $0x28] sm:$0xff]
      %v182 = vld [vmem:[%s158 + $0x30] sm:$0xff]
      %v183 = vld [vmem:[%s158 + $0x38] sm:$0xff]
      %v184 = vld [vmem:[%s158 + $0x40] sm:$0xff]
      %v185 = vld [vmem:[%s158 + $0x48] sm:$0xff]
      %v186 = vld [vmem:[%s158 + $0x50] sm:$0xff]
      %v187 = vld [vmem:[%s158 + $0x58] sm:$0xff]
      %v188 = vld [vmem:[%s158 + $0x60] sm:$0xff]
      %v189 = vld [vmem:[%s158 + $0x68] sm:$0xff]
      %v190 = vld [vmem:[%s158 + $0x70] sm:$0xff]
      %v191 = vld [vmem:[%s158 + $0x78] sm:$0xff]
      %v192 = vld [vmem:[%s158 + $0x80] sm:$0xff]
      %v193 = vld [vmem:[%s158 + $0x88] sm:$0xff]
      %v194 = vld [vmem:[%s158 + $0x90] sm:$0xff]
      %v195 = vld [vmem:[%s158 + $0x98] sm:$0xff]
      %v196 = vld [vmem:[%s158 + $0xa0] sm:$0xff]
      %v197 = vld [vmem:[%s158 + $0xa8] sm:$0xff]
      %v198 = vld [vmem:[%s158 + $0xb0] sm:$0xff]
      %v199 = vld [vmem:[%s158 + $0xb8] sm:$0xff]
      %v200 = vld [vmem:[%s158 + $0xc0] sm:$0xff]
      %v201 = vld [vmem:[%s158 + $0xc8] sm:$0xff]
      %v202 = vld [vmem:[%s158 + $0xd0] sm:$0xff]
      %v203 = vld [vmem:[%s158 + $0xd8] sm:$0xff]
      %v204 = vld [vmem:[%s158 + $0xe0] sm:$0xff]
      %v205 = vld [vmem:[%s158 + $0xe8] sm:$0xff]
      %v206 = vld [vmem:[%s158 + $0xf0] sm:$0xff]
      %v207 = vld [vmem:[%s158 + $0xf8] sm:$0xff]
      %209 = vset.pattern.permute.xlu0 0
      %210 = vperm.xlu0 %209, %v176
      %v211 = vpop.permute.xlu0 %210
      %214 = vset.pattern.permute.xlu0 0
      %215 = vperm.xlu0 %214, %v177
      %v216 = vpop.permute.xlu0 %215
      %219 = vset.pattern.permute.xlu0 0
      %220 = vperm.xlu0 %219, %v178
      %v221 = vpop.permute.xlu0 %220
      %224 = vset.pattern.permute.xlu0 0
      %225 = vperm.xlu0 %224, %v179
      %v226 = vpop.permute.xlu0 %225
      %229 = vset.pattern.permute.xlu0 0
      %230 = vperm.xlu0 %229, %v180
      %v231 = vpop.permute.xlu0 %230
      %234 = vset.pattern.permute.xlu0 0
      %235 = vperm.xlu0 %234, %v181
      %v236 = vpop.permute.xlu0 %235
      %239 = vset.pattern.permute.xlu0 0
      %240 = vperm.xlu0 %239, %v182
      %v241 = vpop.permute.xlu0 %240
      %244 = vset.pattern.permute.xlu0 0
      %245 = vperm.xlu0 %244, %v183
      %v246 = vpop.permute.xlu0 %245
      %249 = vset.pattern.permute.xlu0 0
      %250 = vperm.xlu0 %249, %v184
      %v251 = vpop.permute.xlu0 %250
      %254 = vset.pattern.permute.xlu0 0
      %255 = vperm.xlu0 %254, %v185
      %v256 = vpop.permute.xlu0 %255
      %259 = vset.pattern.permute.xlu0 0
      %260 = vperm.xlu0 %259, %v186
      %v261 = vpop.permute.xlu0 %260
      %264 = vset.pattern.permute.xlu0 0
      %265 = vperm.xlu0 %264, %v187
      %v266 = vpop.permute.xlu0 %265
      %269 = vset.pattern.permute.xlu0 0
      %270 = vperm.xlu0 %269, %v188
      %v271 = vpop.permute.xlu0 %270
      %274 = vset.pattern.permute.xlu0 0
      %275 = vperm.xlu0 %274, %v189
      %v276 = vpop.permute.xlu0 %275
      %279 = vset.pattern.permute.xlu0 0
      %280 = vperm.xlu0 %279, %v190
      %v281 = vpop.permute.xlu0 %280
      %284 = vset.pattern.permute.xlu0 0
      %285 = vperm.xlu0 %284, %v191
      %v286 = vpop.permute.xlu0 %285
      %289 = vset.pattern.permute.xlu0 0
      %290 = vperm.xlu0 %289, %v192
      %v291 = vpop.permute.xlu0 %290
      %294 = vset.pattern.permute.xlu0 0
      %295 = vperm.xlu0 %294, %v193
      %v296 = vpop.permute.xlu0 %295
      %299 = vset.pattern.permute.xlu0 0
      %300 = vperm.xlu0 %299, %v194
      %v301 = vpop.permute.xlu0 %300
      %304 = vset.pattern.permute.xlu0 0
      %305 = vperm.xlu0 %304, %v195
      %v306 = vpop.permute.xlu0 %305
      %309 = vset.pattern.permute.xlu0 0
      %310 = vperm.xlu0 %309, %v196
      %v311 = vpop.permute.xlu0 %310
      %314 = vset.pattern.permute.xlu0 0
      %315 = vperm.xlu0 %314, %v197
      %v316 = vpop.permute.xlu0 %315
      %319 = vset.pattern.permute.xlu0 0
      %320 = vperm.xlu0 %319, %v198
      %v321 = vpop.permute.xlu0 %320
      %324 = vset.pattern.permute.xlu0 0
      %325 = vperm.xlu0 %324, %v199
      %v326 = vpop.permute.xlu0 %325
      %329 = vset.pattern.permute.xlu0 0
      %330 = vperm.xlu0 %329, %v200
      %v331 = vpop.permute.xlu0 %330
      %334 = vset.pattern.permute.xlu0 0
      %335 = vperm.xlu0 %334, %v201
      %v336 = vpop.permute.xlu0 %335
      %339 = vset.pattern.permute.xlu0 0
      %340 = vperm.xlu0 %339, %v202
      %v341 = vpop.permute.xlu0 %340
      %344 = vset.pattern.permute.xlu0 0
      %345 = vperm.xlu0 %344, %v203
      %v346 = vpop.permute.xlu0 %345
      %349 = vset.pattern.permute.xlu0 0
      %350 = vperm.xlu0 %349, %v204
      %v351 = vpop.permute.xlu0 %350
      %354 = vset.pattern.permute.xlu0 0
      %355 = vperm.xlu0 %354, %v205
      %v356 = vpop.permute.xlu0 %355
      %359 = vset.pattern.permute.xlu0 0
      %360 = vperm.xlu0 %359, %v206
      %v361 = vpop.permute.xlu0 %360
      %364 = vset.pattern.permute.xlu0 0
      %365 = vperm.xlu0 %364, %v207
      %v366 = vpop.permute.xlu0 %365
      %368 = vst [vmem:[%s173] sm:$0xff] %v211
      %369 = vst [vmem:[%s173 + $0x8] sm:$0xff] %v211
      %370 = vst [vmem:[%s173 + $0x10] sm:$0xff] %v216
      %371 = vst [vmem:[%s173 + $0x18] sm:$0xff] %v216
      %372 = vst [vmem:[%s173 + $0x20] sm:$0xff] %v221
      %373 = vst [vmem:[%s173 + $0x28] sm:$0xff] %v221
      %374 = vst [vmem:[%s173 + $0x30] sm:$0xff] %v226
      %375 = vst [vmem:[%s173 + $0x38] sm:$0xff] %v226
      %376 = vst [vmem:[%s173 + $0x40] sm:$0xff] %v231
      %377 = vst [vmem:[%s173 + $0x48] sm:$0xff] %v231
      %378 = vst [vmem:[%s173 + $0x50] sm:$0xff] %v236
      %379 = vst [vmem:[%s173 + $0x58] sm:$0xff] %v236
      %380 = vst [vmem:[%s173 + $0x60] sm:$0xff] %v241
      %381 = vst [vmem:[%s173 + $0x68] sm:$0xff] %v241
      %382 = vst [vmem:[%s173 + $0x70] sm:$0xff] %v246
      %383 = vst [vmem:[%s173 + $0x78] sm:$0xff] %v246
      %384 = vst [vmem:[%s173 + $0x80] sm:$0xff] %v251
      %385 = vst [vmem:[%s173 + $0x88] sm:$0xff] %v251
      %386 = vst [vmem:[%s173 + $0x90] sm:$0xff] %v256
      %387 = vst [vmem:[%s173 + $0x98] sm:$0xff] %v256
      %388 = vst [vmem:[%s173 + $0xa0] sm:$0xff] %v261
      %389 = vst [vmem:[%s173 + $0xa8] sm:$0xff] %v261
      %390 = vst [vmem:[%s173 + $0xb0] sm:$0xff] %v266
      %391 = vst [vmem:[%s173 + $0xb8] sm:$0xff] %v266
      %392 = vst [vmem:[%s173 + $0xc0] sm:$0xff] %v271
      %393 = vst [vmem:[%s173 + $0xc8] sm:$0xff] %v271
      %394 = vst [vmem:[%s173 + $0xd0] sm:$0xff] %v276
      %395 = vst [vmem:[%s173 + $0xd8] sm:$0xff] %v276
      %396 = vst [vmem:[%s173 + $0xe0] sm:$0xff] %v281
      %397 = vst [vmem:[%s173 + $0xe8] sm:$0xff] %v281
      %398 = vst [vmem:[%s173 + $0xf0] sm:$0xff] %v286
      %399 = vst [vmem:[%s173 + $0xf8] sm:$0xff] %v286
      %400 = vst [vmem:[%s173 + $0x100] sm:$0xff] %v291
      %401 = vst [vmem:[%s173 + $0x108] sm:$0xff] %v291
      %402 = vst [vmem:[%s173 + $0x110] sm:$0xff] %v296
      %403 = vst [vmem:[%s173 + $0x118] sm:$0xff] %v296
      %404 = vst [vmem:[%s173 + $0x120] sm:$0xff] %v301
      %405 = vst [vmem:[%s173 + $0x128] sm:$0xff] %v301
      %406 = vst [vmem:[%s173 + $0x130] sm:$0xff] %v306
      %407 = vst [vmem:[%s173 + $0x138] sm:$0xff] %v306
      %408 = vst [vmem:[%s173 + $0x140] sm:$0xff] %v311
      %409 = vst [vmem:[%s173 + $0x148] sm:$0xff] %v311
      %410 = vst [vmem:[%s173 + $0x150] sm:$0xff] %v316
      %411 = vst [vmem:[%s173 + $0x158] sm:$0xff] %v316
      %412 = vst [vmem:[%s173 + $0x160] sm:$0xff] %v321
      %413 = vst [vmem:[%s173 + $0x168] sm:$0xff] %v321
      %414 = vst [vmem:[%s173 + $0x170] sm:$0xff] %v326
      %415 = vst [vmem:[%s173 + $0x178] sm:$0xff] %v326
      %416 = vst [vmem:[%s173 + $0x180] sm:$0xff] %v331
      %417 = vst [vmem:[%s173 + $0x188] sm:$0xff] %v331
      %418 = vst [vmem:[%s173 + $0x190] sm:$0xff] %v336
      %419 = vst [vmem:[%s173 + $0x198] sm:$0xff] %v336
      %420 = vst [vmem:[%s173 + $0x1a0] sm:$0xff] %v341
      %421 = vst [vmem:[%s173 + $0x1a8] sm:$0xff] %v341
      %422 = vst [vmem:[%s173 + $0x1b0] sm:$0xff] %v346
      %423 = vst [vmem:[%s173 + $0x1b8] sm:$0xff] %v346
      %424 = vst [vmem:[%s173 + $0x1c0] sm:$0xff] %v351
      %425 = vst [vmem:[%s173 + $0x1c8] sm:$0xff] %v351
      %426 = vst [vmem:[%s173 + $0x1d0] sm:$0xff] %v356
      %427 = vst [vmem:[%s173 + $0x1d8] sm:$0xff] %v356
      %428 = vst [vmem:[%s173 + $0x1e0] sm:$0xff] %v361
      %429 = vst [vmem:[%s173 + $0x1e8] sm:$0xff] %v361
      %430 = vst [vmem:[%s173 + $0x1f0] sm:$0xff] %v366
      %431 = vst [vmem:[%s173 + $0x1f8] sm:$0xff] %v366
      %s432 = smul.u32 32, %s18
      %s433 = smul.u32 2, %s19
      %p434 = scmp.lt.s32.totalorder %s17, 1
      %s435 = scalar_select %p434, %s17, 1
      %p436 = scmp.lt.s32.totalorder %s432, 31
      %s437 = scalar_select %p436, %s432, 31
      %p438 = scmp.lt.s32.totalorder %s433, 1
      %s439 = scalar_select %p438, %s433, 1
      %s440 = smul.addr %s437, 2
      %s441 = sadd.s32 %s439, %s440
      %s442 = smul.addr %s435, 64
      %s443 = sadd.s32 %s441, %s442
      %s444 = smul.addr %s443, 8
      %s445 = scalar_lea.vmem %s1, %s444
      // Predicated region
      $region25: #{aspp_image_pooler.3} parent=23 // pred_check
        %p446 = pneg %p81
      $region26: #{aspp_image_pooler.3} parent=23 // pred_check_branch
        %448 = sbr.rel (%p446) target = $region28
      $region27: #{aspp_image_pooler.3} parent=23 // pred_region
        %s449 = smul.u32 32, %s18
        %s450 = smul.u32 2, %s19
      $region28: #{aspp_image_pooler.3} parent=23 // pred_fallthru
        _
    $region24: #{aspp_image_pooler.3} parent=5 // pred_fallthru
      _
    %p451 = scmp.le.s32.totalorder 2, %s7
    // Predicated region
    $region29: #{aspp_image_pooler.3} parent=5 // pred_check
      %p452 = pneg %p451
    $region30: #{aspp_image_pooler.3} parent=5 // pred_check_branch
      %454 = sbr.rel (%p452) target = $region32
    $region31: #{aspp_image_pooler.3} parent=5 // pred_region
      %s455 = ssub.s32 %s7, 2
      // Predicated region
      $region33: #{aspp_image_pooler.3} parent=31 // pred_check
        %p456 = pneg %p87
      $region34: #{aspp_image_pooler.3} parent=31 // pred_check_branch
        %458 = sbr.rel (%p456) target = $region36
      $region35: #{aspp_image_pooler.3} parent=31 // pred_region
        %s459 = smul.u32 32, %s21
        %s460 = smul.u32 2, %s22
        %p461 = scmp.lt.s32.totalorder %s20, 1
        %s462 = scalar_select %p461, %s20, 1
        %p463 = scmp.lt.s32.totalorder %s459, 31
        %s464 = scalar_select %p463, %s459, 31
        %p465 = scmp.lt.s32.totalorder %s460, 1
        %s466 = scalar_select %p465, %s460, 1
        %s467 = smul.addr %s464, 2
        %s468 = sadd.s32 %s466, %s467
        %s469 = smul.addr %s462, 64
        %s470 = sadd.s32 %s468, %s469
        %s471 = smul.addr %s470, 8
        %s472 = scalar_lea.vmem %s1, %s471
      $region36: #{aspp_image_pooler.3} parent=31 // pred_fallthru
        _
    $region32: #{aspp_image_pooler.3} parent=5 // pred_fallthru
      _
  $region6: #{aspp_image_pooler.3} parent=0 // loop_footer
    %s11 = sadd.s32 1, %s7
  $region7: #{aspp_image_pooler.3} parent=0 // loop_footer_branch
    %6 = sbr.rel target = $region3
  $region8: #{aspp_image_pooler.3} parent=0 // loop_exit
    _

// kernel: aspp_image_pooler.2
$region0: #{aspp_image_pooler.2}
  #allocation0 [shape = 'u32[]', space=smem, size = 0x4, offset = 0x4, fixed_abs, tag = 'smem constant byte address 0x4 - core index']
  #allocation1 [shape = 'u32[144,128]{1,0:T(1,128)}', space=vmem, size = 0x12000, scoped, tag = 'internal scratch']
  #allocation2 [shape = 'f32[4,8]{1,0:T(4,128)}', space=vmem, size = 0x800, scoped, tag = 'scratch operand']
  %s0 = inlined_call_operand.vmem [shape: f32[2,4,8,256], index: 0, kind: input, shape index: {}]
  %s1 = inlined_call_operand.vmem [shape: f32[32,4], index: 1, kind: input, shape index: {}]
  %s2 = inlined_call_operand.vmem [shape: f32[32,1], index: 2, kind: input, shape index: {}]
  %s3 = inlined_call_operand.vmem [shape: f32[32,1], index: 3, kind: input, shape index: {}]
  %s4 = inlined_call_operand.vmem [shape: f32[2,32,8], index: 4, kind: output, shape index: {}]
  %s5 = sld [smem:[#allocation0]]
  $region57: #{aspp_image_pooler.2} parent=0
    _
  %s7 = ssub.s32 1, %s5
  %s8 = scalar_select 0, %s7, %s5
  loop: start=0, step=1, limit=4
  $region2: #{aspp_image_pooler.2} parent=0 // loop_pre_header
    _
  $region3: #{aspp_image_pooler.2} parent=0 // loop_header
    %s10 = sphi 0, %s14
    %p11 = scmp.ge.s32.totalorder %s10, 4
    %s17 = sphi 0, %s36
    %s18 = sphi 0, %s32
    %s19 = sphi 0, %s28
    %s20 = sphi 0, %s17
    %s21 = sphi 0, %s18
    %s22 = sphi 0, %s19
    %s23 = sphi 0, %s20
    %s24 = sphi 0, %s21
    %s25 = sphi 0, %s22
    %s43 = sphi 0, %s45
    %s46 = sphi 0, %s43
    %s47 = sphi 0, %s46
    %s63 = sphi 0, %s47
    %s67 = sphi 0, %s67
    %s69 = sphi 0, %s67
    %s70 = sphi 0, %s69
    %s84 = sphi 0, %s70
    %s88 = sphi 0, %s88
    %s90 = sphi 0, %s88
    %s91 = sphi 0, %s90
    %s105 = sphi 0, %s91
    %s109 = sphi 0, %s109
    %s111 = sphi 0, %s109
    %s112 = sphi 0, %s111
    %s126 = sphi 0, %s112
    %s132 = sphi 0, %s134
    %s135 = sphi 0, %s132
    %s136 = sphi 0, %s135
    %s152 = sphi 0, %s136
  $region4: #{aspp_image_pooler.2} parent=0 // loop_header_branch
    %13 = sbr.rel (%p11) target = $region8
  $region5: #{aspp_image_pooler.2} parent=0 // loop_body
    %s15 = ssub.s32 %s10, 1
    %s16 = ssub.s32 %s10, 2
    %s26 = sadd.s32 1, %s19
    %p27 = scmp.ge.s32.totalorder %s26, 1
    %s28 = scalar_select %p27, 0, %s26
    %s29 = sadd.s32 1, %s18
    %s30 = scalar_select %p27, %s29, %s18
    %p31 = scmp.ge.s32.totalorder %s30, 1
    %s32 = scalar_select %p31, 0, %s30
    %s33 = sadd.s32 1, %s17
    %s34 = scalar_select %p31, %s33, %s17
    %p35 = scmp.ge.s32.totalorder %s34, 2
    %s36 = scalar_select %p35, 0, %s34
    %s37 = ssub.s32 %s17, %s36
    %s38 = ssub.s32 %s18, %s32
    %s39 = sor.u32 %s37, %s38
    %s40 = ssub.s32 %s19, %s28
    %s41 = sor.u32 %s39, %s40
    %p42 = scmp.eq.s32.totalorder %s41, 0
    %s44 = sadd.s32 %s43, 1
    %s45 = scalar_select %p42, %s43, %s44
    %p48 = pneg %p42
    %p49 = scmp.eq.s32.totalorder %s10, 1
    %p50 = por %p48, %p49
    %p51 = scmp.ne.s32.totalorder %s43, %s46
    %p52 = scmp.eq.s32.totalorder %s10, 0
    %p53 = por %p51, %p52
    %p54 = scmp.ne.s32.totalorder %s43, %s46
    %p55 = scmp.eq.s32.totalorder %s15, 1
    %p56 = por %p54, %p55
    %p57 = scmp.ne.s32.totalorder %s46, %s47
    %p58 = scmp.eq.s32.totalorder %s15, 0
    %p59 = por %p57, %p58
    %p60 = scmp.ne.s32.totalorder %s46, %s47
    %p61 = scmp.eq.s32.totalorder %s16, 1
    %p62 = por %p60, %p61
    %p64 = scmp.ne.s32.totalorder %s47, %s63
    %p65 = scmp.eq.s32.totalorder %s16, 0
    %p66 = por %p64, %p65
    %s68 = sadd.s32 %s67, 1
    %p71 = scmp.eq.s32.totalorder %s10, 1
    %p72 = scmp.ne.s32.totalorder %s67, %s69
    %p73 = scmp.eq.s32.totalorder %s10, 0
    %p74 = por %p72, %p73
    %p75 = scmp.ne.s32.totalorder %s67, %s69
    %p76 = scmp.eq.s32.totalorder %s15, 1
    %p77 = por %p75, %p76
    %p78 = scmp.ne.s32.totalorder %s69, %s70
    %p79 = scmp.eq.s32.totalorder %s15, 0
    %p80 = por %p78, %p79
    %p81 = scmp.ne.s32.totalorder %s69, %s70
    %p82 = scmp.eq.s32.totalorder %s16, 1
    %p83 = por %p81, %p82
    %p85 = scmp.ne.s32.totalorder %s70, %s84
    %p86 = scmp.eq.s32.totalorder %s16, 0
    %p87 = por %p85, %p86
    %s89 = sadd.s32 %s88, 1
    %p92 = scmp.eq.s32.totalorder %s10, 1
    %p93 = scmp.ne.s32.totalorder %s88, %s90
    %p94 = scmp.eq.s32.totalorder %s10, 0
    %p95 = por %p93, %p94
    %p96 = scmp.ne.s32.totalorder %s88, %s90
    %p97 = scmp.eq.s32.totalorder %s15, 1
    %p98 = por %p96, %p97
    %p99 = scmp.ne.s32.totalorder %s90, %s91
    %p100 = scmp.eq.s32.totalorder %s15, 0
    %p101 = por %p99, %p100
    %p102 = scmp.ne.s32.totalorder %s90, %s91
    %p103 = scmp.eq.s32.totalorder %s16, 1
    %p104 = por %p102, %p103
    %p106 = scmp.ne.s32.totalorder %s91, %s105
    %p107 = scmp.eq.s32.totalorder %s16, 0
    %p108 = por %p106, %p107
    %s110 = sadd.s32 %s109, 1
    %p113 = scmp.eq.s32.totalorder %s10, 1
    %p114 = scmp.ne.s32.totalorder %s109, %s111
    %p115 = scmp.eq.s32.totalorder %s10, 0
    %p116 = por %p114, %p115
    %p117 = scmp.ne.s32.totalorder %s109, %s111
    %p118 = scmp.eq.s32.totalorder %s15, 1
    %p119 = por %p117, %p118
    %p120 = scmp.ne.s32.totalorder %s111, %s112
    %p121 = scmp.eq.s32.totalorder %s15, 0
    %p122 = por %p120, %p121
    %p123 = scmp.ne.s32.totalorder %s111, %s112
    %p124 = scmp.eq.s32.totalorder %s16, 1
    %p125 = por %p123, %p124
    %p127 = scmp.ne.s32.totalorder %s112, %s126
    %p128 = scmp.eq.s32.totalorder %s16, 0
    %p129 = por %p127, %p128
    %s130 = ssub.s32 %s17, %s36
    %p131 = scmp.eq.s32.totalorder %s130, 0
    %s133 = sadd.s32 %s132, 1
    %s134 = scalar_select %p131, %s132, %s133
    %p137 = pneg %p131
    %p138 = scmp.eq.s32.totalorder %s10, 1
    %p139 = por %p137, %p138
    %p140 = scmp.ne.s32.totalorder %s132, %s135
    %p141 = scmp.eq.s32.totalorder %s10, 0
    %p142 = por %p140, %p141
    %p143 = scmp.ne.s32.totalorder %s132, %s135
    %p144 = scmp.eq.s32.totalorder %s15, 1
    %p145 = por %p143, %p144
    %p146 = scmp.ne.s32.totalorder %s135, %s136
    %p147 = scmp.eq.s32.totalorder %s15, 0
    %p148 = por %p146, %p147
    %p149 = scmp.ne.s32.totalorder %s135, %s136
    %p150 = scmp.eq.s32.totalorder %s16, 1
    %p151 = por %p149, %p150
    %p153 = scmp.ne.s32.totalorder %s136, %s152
    %p154 = scmp.eq.s32.totalorder %s16, 0
    %p155 = por %p153, %p154
    %p156 = scmp.le.s32.totalorder 1, %s10
    %p157 = scmp.lt.s32.totalorder %s10, 3
    %p158 = pnand %p156, %p157
    %p159 = pneg %p158
    // Predicated region
    $region9: #{aspp_image_pooler.2} parent=5 // pred_check
      _
    $region10: #{aspp_image_pooler.2} parent=5 // pred_check_branch
      %161 = sbr.rel (%p158) target = $region12
    $region11: #{aspp_image_pooler.2} parent=5 // pred_region
      %s162 = ssub.s32 %s10, 1
      // Predicated region
      $region13: #{aspp_image_pooler.2} parent=11 // pred_check
        %p163 = pneg %p80
      $region14: #{aspp_image_pooler.2} parent=11 // pred_check_branch
        %165 = sbr.rel (%p163) target = $region16
      $region15: #{aspp_image_pooler.2} parent=11 // pred_region
        _
      $region16: #{aspp_image_pooler.2} parent=11 // pred_fallthru
        _
      // Predicated region
      $region17: #{aspp_image_pooler.2} parent=11 // pred_check
        %p166 = pneg %p101
      $region18: #{aspp_image_pooler.2} parent=11 // pred_check_branch
        %168 = sbr.rel (%p166) target = $region20
      $region19: #{aspp_image_pooler.2} parent=11 // pred_region
        _
      $region20: #{aspp_image_pooler.2} parent=11 // pred_fallthru
        _
      // Predicated region
      $region21: #{aspp_image_pooler.2} parent=11 // pred_check
        %p169 = pneg %p122
      $region22: #{aspp_image_pooler.2} parent=11 // pred_check_branch
        %171 = sbr.rel (%p169) target = $region24
      $region23: #{aspp_image_pooler.2} parent=11 // pred_region
        _
      $region24: #{aspp_image_pooler.2} parent=11 // pred_fallthru
        _
    $region12: #{aspp_image_pooler.2} parent=5 // pred_fallthru
      _
    %p172 = scmp.lt.s32.totalorder %s10, 2
    // Predicated region
    $region25: #{aspp_image_pooler.2} parent=5 // pred_check
      %p173 = pneg %p172
    $region26: #{aspp_image_pooler.2} parent=5 // pred_check_branch
      %175 = sbr.rel (%p173) target = $region28
    $region27: #{aspp_image_pooler.2} parent=5 // pred_region
      // Predicated region
      $region29: #{aspp_image_pooler.2} parent=27 // pred_check
        %p176 = pneg %p53
      $region30: #{aspp_image_pooler.2} parent=27 // pred_check_branch
        %178 = sbr.rel (%p176) target = $region32
      $region31: #{aspp_image_pooler.2} parent=27 // pred_region
        %s179 = smul.u32 4, %s18
        %s180 = smul.u32 2, %s19
        %p181 = scmp.lt.s32.totalorder %s17, 1
        %s182 = scalar_select %p181, %s17, 1
        %p183 = scmp.lt.s32.totalorder %s179, 3
        %s184 = scalar_select %p183, %s179, 3
        %p185 = scmp.lt.s32.totalorder %s180, 1
        %s186 = scalar_select %p185, %s180, 1
        %s187 = smul.addr %s184, 2
        %s188 = sadd.s32 %s186, %s187
        %s189 = smul.addr %s182, 8
        %s190 = sadd.s32 %s188, %s189
        %s191 = smul.addr %s190, 8
        %s192 = scalar_lea.vmem %s0, %s191
        %s193 = smul.u32 4, %s18
        %s194 = smul.u32 2, %s19
      $region32: #{aspp_image_pooler.2} parent=27 // pred_fallthru
        _
    $region28: #{aspp_image_pooler.2} parent=5 // pred_fallthru
      _
    %p195 = scmp.le.s32.totalorder 1, %s10
    %p196 = scmp.lt.s32.totalorder %s10, 3
    %p197 = pnand %p195, %p196
    %p198 = pneg %p197
    // Predicated region
    $region33: #{aspp_image_pooler.2} parent=5 // pred_check
      _
    $region34: #{aspp_image_pooler.2} parent=5 // pred_check_branch
      %200 = sbr.rel (%p197) target = $region36
    $region35: #{aspp_image_pooler.2} parent=5 // pred_region
      %s201 = ssub.s32 %s10, 1
      %s202 = smul.u32 4, %s21
      %s203 = smul.u32 2, %s22
      %p204 = scmp.lt.s32.totalorder %s20, 1
      %s205 = scalar_select %p204, %s20, 1
      %p206 = scmp.lt.s32.totalorder %s202, 3
      %s207 = scalar_select %p206, %s202, 3
      %p208 = scmp.lt.s32.totalorder %s203, 1
      %s209 = scalar_select %p208, %s203, 1
      %s210 = smul.addr %s207, 2
      %s211 = sadd.s32 %s209, %s210
      %s212 = smul.addr %s205, 8
      %s213 = sadd.s32 %s211, %s212
      %s214 = smul.addr %s213, 8
      %s215 = scalar_lea.vmem %s0, %s214
      %p216 = pneg %p59
      %p217 = pneg %p56
      %p218 = pneg %p80
      %p219 = pneg %p77
      %p220 = pneg %p101
      %p221 = pneg %p98
      %p222 = pneg %p122
      %p223 = pneg %p119
      %p224 = pneg %p148
      %p225 = pneg %p145
      %p226 = scmp.lt.s32.totalorder %s20, 1
      %s227 = scalar_select %p226, %s20, 1
      %s228 = smul.addr %s227, 4
      %s229 = smul.addr %s228, 8
      %s230 = scalar_lea.vmem %s4, %s229
      %s231 = smul.u32 4, %s21
      %s232 = smul.u32 2, %s22
      %p233 = scmp.lt.s32.totalorder %s20, 1
      %s234 = scalar_select %p233, %s20, 1
      %p235 = scmp.lt.s32.totalorder %s231, 3
      %s236 = scalar_select %p235, %s231, 3
      %p237 = scmp.lt.s32.totalorder %s232, 1
      %s238 = scalar_select %p237, %s232, 1
      %s239 = smul.addr %s236, 2
      %s240 = sadd.s32 %s238, %s239
      %s241 = smul.addr %s234, 8
      %s242 = sadd.s32 %s240, %s241
      %s243 = smul.addr %s242, 8
      %s244 = scalar_lea.vmem %s0, %s243
      %s245 = smul.u32 4, %s21
      %s246 = smul.u32 2, %s22
      %p247 = scmp.lt.s32.totalorder %s20, 1
      %s248 = scalar_select %p247, %s20, 1
      %s249 = smul.addr %s248, 4
      %s250 = smul.addr %s249, 8
      %s251 = scalar_lea.vmem %s4, %s250
      %p252 = scmp.eq.s32.totalorder %s21, 0
      %p253 = scmp.eq.s32.totalorder %s22, 0
      %p254 = pnand %p252, %p253
      %p255 = pneg %p254
      // Predicated region
      $region37: #{aspp_image_pooler.2} parent=35 // pred_check
        _
      $region38: #{aspp_image_pooler.2} parent=35 // pred_check_branch
        %257 = sbr.rel (%p254) target = $region40
      $region39: #{aspp_image_pooler.2} parent=35 // pred_region
        %vm258 = vcmask 60416
        %259 = vst.msk [vmem:[#allocation2] sm:$0xf] %vm258, 0.0
      $region40: #{aspp_image_pooler.2} parent=35 // pred_fallthru
        _
      %v260 = vld [vmem:[%s244] sm:$0xff]
      %v261 = vld [vmem:[%s244 + $0x8] sm:$0xff]
      %v262 = vld [vmem:[%s244 + $0x10] sm:$0xff]
      %v263 = vld [vmem:[%s244 + $0x18] sm:$0xff]
      %v264 = vld [vmem:[%s244 + $0x20] sm:$0xff]
      %v265 = vld [vmem:[%s244 + $0x28] sm:$0xff]
      %v266 = vld [vmem:[%s244 + $0x30] sm:$0xff]
      %v267 = vld [vmem:[%s244 + $0x38] sm:$0xff]
      %v268 = vadd.f32 %v260, %v261
      %269 = vadd.xlane.f32.xlu0 %v268
      %v270 = vpop.xlane.xlu0 %269
      %v271 = vadd.f32 %v262, %v263
      %272 = vadd.xlane.f32.xlu0 %v271
      %v273 = vpop.xlane.xlu0 %272
      %v274 = vadd.f32 %v264, %v265
      %275 = vadd.xlane.f32.xlu0 %v274
      %v276 = vpop.xlane.xlu0 %275
      %v277 = vadd.f32 %v266, %v267
      %278 = vadd.xlane.f32.xlu0 %v277
      %v279 = vpop.xlane.xlu0 %278
      %v280 = vld [vmem:[#allocation2] sm:$0xf]
      %v285 = vlaneseq
      %v286 = vand.u32 %v285, 127
      %v287 = vlaneseq
      %v288 = vshrl.u32 %v287, 7
      %v289 = vsub.s32 %v286, %v288
      %v290 = vrot.slane %v270, %v289
      %v291 = vlaneseq
      %v292 = vshrl.u32 %v291, 7
      %v293 = vsub.s32 %v286, %v292
      %v294 = vrot.slane %v273, %v293
      %v295 = vlaneseq
      %v296 = vshrl.u32 %v295, 7
      %v297 = vsub.s32 %v286, %v296
      %v298 = vrot.slane %v276, %v297
      %v299 = vlaneseq
      %v300 = vshrl.u32 %v299, 7
      %v301 = vsub.s32 %v286, %v300
      %v302 = vrot.slane %v279, %v301
      %vm303 = vcmask 1041409
      %v304 = vsel %vm303, %v294, %v290
      %vm305 = vcmask 1042434
      %v306 = vsel %vm305, %v298, %v304
      %vm307 = vcmask 1043459
      %v308 = vsel %vm307, %v302, %v306
      %v310 = vadd.f32 %v280, %v308
      %vm311 = vcmask 60416
      %312 = vst.msk [vmem:[#allocation2] sm:$0xf] %vm311, %v310
      // Predicated region
      $region41: #{aspp_image_pooler.2} parent=35 // pred_check
        _
      $region42: #{aspp_image_pooler.2} parent=35 // pred_check_branch
        %314 = sbr.rel (%p254) target = $region44
      $region43: #{aspp_image_pooler.2} parent=35 // pred_region
        %v315 = vld [vmem:[#allocation2] sm:$0xf]
        %v316 = vmul.f32 %v315, 0.00390625
        %v317 = vld [vmem:[%s1] sm:$0xff]
        %v318 = vld [vmem:[%s1 + $0x8] sm:$0xff]
        %v319 = vld [vmem:[%s1 + $0x10] sm:$0xff]
        %v320 = vld [vmem:[%s1 + $0x18] sm:$0xff]
        %vm321 = vcmask 31744
        %v323 = vsel %vm321, %v317, 0
        %v326 = vsel %vm321, %v318, 0
        %v329 = vsel %vm321, %v319, 0
        %v332 = vsel %vm321, %v320, 0
        %vm334 = vcmask 1043456
        %v336 = vsel %vm334, %v316, 0
        %338 = vmatprep.subr.mxu0 0.0
        %339 = vmatpush1.msra.mxu0 %v336
        %340 = vmatprep.subr.mxu0 0.0
        %341 = vmatpush1.msra.mxu0 0.0
        %342 = vmatprep.subr.mxu0 0.0
        %343 = vmatpush1.msra.mxu0 0.0
        %344 = vmatprep.subr.mxu0 0.0
        %345 = vmatpush1.msra.mxu0 0.0
        %346 = vmatprep.subr.mxu0 0.0
        %347 = vmatpush1.msra.mxu0 0.0
        %348 = vmatprep.subr.mxu0 0.0
        %349 = vmatpush1.msra.mxu0 0.0
        %350 = vmatprep.subr.mxu0 0.0
        %351 = vmatpush1.msra.mxu0 0.0
        %352 = vmatprep.subr.mxu0 0.0
        %353 = vmatpush1.msra.mxu0 0.0
        %354 = vmatprep.subr.mxu0 0.0
        %355 = vmatpush1.msra.mxu0 0.0
        %356 = vmatprep.subr.mxu0 0.0
        %357 = vmatpush1.msra.mxu0 0.0
        %358 = vmatprep.subr.mxu0 0.0
        %359 = vmatpush1.msra.mxu0 0.0
        %360 = vmatprep.subr.mxu0 0.0
        %361 = vmatpush1.msra.mxu0 0.0
        %362 = vmatprep.subr.mxu0 0.0
        %363 = vmatpush1.msra.mxu0 0.0
        %364 = vmatprep.subr.mxu0 0.0
        %365 = vmatpush1.msra.mxu0 0.0
        %366 = vmatprep.subr.mxu0 0.0
        %367 = vmatpush1.msra.mxu0 0.0
        %368 = vmatprep.subr.mxu0 0.0
        %369 = vmatpush1.msra.mxu0 0.0
        %370 = vmatprep.subr.mxu0 0.0
        %371 = vmatpush1.msra.mxu0 0.0
        %372 = vmatprep.subr.mxu0 0.0
        %373 = vmatpush1.msra.mxu0 0.0
        %374 = vmatprep.subr.mxu0 0.0
        %375 = vmatpush1.msra.mxu0 0.0
        %376 = vmatprep.subr.mxu0 0.0
        %377 = vmatpush1.msra.mxu0 0.0
        %378 = vmatprep.subr.mxu0 0.0
        %379 = vmatpush1.msra.mxu0 0.0
        %380 = vmatprep.subr.mxu0 0.0
        %381 = vmatpush1.msra.mxu0 0.0
        %382 = vmatprep.subr.mxu0 0.0
        %383 = vmatpush1.msra.mxu0 0.0
        %384 = vmatprep.subr.mxu0 0.0
        %385 = vmatpush1.msra.mxu0 0.0
        %386 = vmatprep.subr.mxu0 0.0
        %387 = vmatpush1.msra.mxu0 0.0
        %388 = vmatprep.subr.mxu0 0.0
        %389 = vmatpush1.msra.mxu0 0.0
        %390 = vmatprep.subr.mxu0 0.0
        %391 = vmatpush1.msra.mxu0 0.0
        %392 = vmatprep.subr.mxu0 0.0
        %393 = vmatpush1.msra.mxu0 0.0
        %394 = vmatprep.subr.mxu0 0.0
        %395 = vmatpush1.msra.mxu0 0.0
        %396 = vmatprep.subr.mxu0 0.0
        %397 = vmatpush1.msra.mxu0 0.0
        %398 = vmatprep.subr.mxu0 0.0
        %399 = vmatpush1.msra.mxu0 0.0
        %400 = vmatprep.subr.mxu0 0.0
        %401 = vmatpush1.msra.mxu0 0.0
        %402 = vmatprep.mubr.f32.mxu0 0.0
        %403 = vmatmul.mubr.f32.gmra.mrb[0].mxu0 %v323
        %v404 = vpop.f32.mrb[0].mxu0
        %v405 = vadd.f32 0.0, %v404
        %v406 = vpop.f32.mrb[0].mxu0
        %407 = vmatprep.mubr.f32.mxu0 0.0
        %408 = vmatmul.mubr.f32.gmra.mrb[0].mxu0 %v326
        %v409 = vpop.f32.mrb[0].mxu0
        %v410 = vadd.f32 0.0, %v409
        %v411 = vpop.f32.mrb[0].mxu0
        %412 = vmatprep.mubr.f32.mxu0 0.0
        %413 = vmatmul.mubr.f32.gmra.mrb[0].mxu0 %v329
        %v414 = vpop.f32.mrb[0].mxu0
        %v415 = vadd.f32 0.0, %v414
        %v416 = vpop.f32.mrb[0].mxu0
        %417 = vmatprep.mubr.f32.mxu0 0.0
        %418 = vmatmul.mubr.f32.gmra.mrb[0].mxu0 %v332
        %v419 = vpop.f32.mrb[0].mxu0
        %v420 = vadd.f32 0.0, %v419
        %v421 = vpop.f32.mrb[0].mxu0
        %422 = vdwg.mxu0
        %v423 = vmax.f32 %v405, 0.0
        %v424 = vmax.f32 %v410, 0.0
        %v425 = vmax.f32 %v415, 0.0
        %v426 = vmax.f32 %v420, 0.0
        %v427 = vlaneseq
        %v428 = vshrl.u32 %v427, 7
        %v429 = vadd.s32 %v428, 8
        %v430 = vmul.u32 %v428, 2
        %v431 = vmul.u32 %v429, 2
        %vm432 = vcmp.ge.s32.totalorder %v286, %v430
        %vm433 = vcmp.ge.s32.totalorder %v286, %v431
        %v434 = vadd.s32 %v428, 1
        %v435 = vadd.s32 %v429, 1
        %v436 = vmul.u32 %v434, 2
        %v437 = vmul.u32 %v435, 2
        %vm438 = vcmp.lt.s32.totalorder %v286, %v436
        %vm439 = vcmp.lt.s32.totalorder %v286, %v437
        %vm440 = vmand %vm432, %vm438
        %vm441 = vmand %vm433, %vm439
        %v442 = vsel %vm440, 1, 0
        %v443 = vsel %vm441, 1, 0
        %v444 = vcvt.s32.f32 %v442
        %v445 = vcvt.s32.f32 %v443
        %v446 = vadd.s32 %v428, 16
        %v447 = vadd.s32 %v428, 24
        %v448 = vmul.u32 %v286, 2
        %vm449 = vcmp.ge.s32.totalorder %v428, %v448
        %vm450 = vcmp.ge.s32.totalorder %v429, %v448
        %vm451 = vcmp.ge.s32.totalorder %v446, %v448
        %vm452 = vcmp.ge.s32.totalorder %v447, %v448
        %v453 = vadd.s32 %v286, 1
        %v454 = vmul.u32 %v453, 2
        %vm455 = vcmp.lt.s32.totalorder %v428, %v454
        %vm456 = vcmp.lt.s32.totalorder %v429, %v454
        %vm457 = vcmp.lt.s32.totalorder %v446, %v454
        %vm458 = vcmp.lt.s32.totalorder %v447, %v454
        %vm459 = vmand %vm449, %vm455
        %vm460 = vmand %vm450, %vm456
        %vm461 = vmand %vm451, %vm457
        %vm462 = vmand %vm452, %vm458
        %v463 = vsel %vm459, 1, 0
        %v464 = vsel %vm460, 1, 0
        %v465 = vsel %vm461, 1, 0
        %v466 = vsel %vm462, 1, 0
        %v467 = vcvt.s32.f32 %v463
        %v468 = vcvt.s32.f32 %v464
        %v469 = vcvt.s32.f32 %v465
        %v470 = vcvt.s32.f32 %v466
        %vm471 = vcmask 261120
        %v473 = vsel %vm471, %v444, 0
        %v476 = vsel %vm471, %v445, 0
        %478 = vmatprep.subr.mxu0 0.0
        %479 = vmatpush1.msra.mxu0 %v423
        %480 = vmatprep.subr.mxu0 0.0
        %481 = vmatpush1.msra.mxu0 %v424
        %482 = vmatprep.subr.mxu0 0.0
        %483 = vmatpush1.msra.mxu0 %v425
        %484 = vmatprep.subr.mxu0 0.0
        %485 = vmatpush1.msra.mxu0 %v426
        %486 = vmatprep.subr.mxu0 0.0
        %487 = vmatpush1.msra.mxu0 0.0
        %488 = vmatprep.subr.mxu0 0.0
        %489 = vmatpush1.msra.mxu0 0.0
        %490 = vmatprep.subr.mxu0 0.0
        %491 = vmatpush1.msra.mxu0 0.0
        %492 = vmatprep.subr.mxu0 0.0
        %493 = vmatpush1.msra.mxu0 0.0
        %494 = vmatprep.subr.mxu0 0.0
        %495 = vmatpush1.msra.mxu0 0.0
        %496 = vmatprep.subr.mxu0 0.0
        %497 = vmatpush1.msra.mxu0 0.0
        %498 = vmatprep.subr.mxu0 0.0
        %499 = vmatpush1.msra.mxu0 0.0
        %500 = vmatprep.subr.mxu0 0.0
        %501 = vmatpush1.msra.mxu0 0.0
        %502 = vmatprep.subr.mxu0 0.0
        %503 = vmatpush1.msra.mxu0 0.0
        %504 = vmatprep.subr.mxu0 0.0
        %505 = vmatpush1.msra.mxu0 0.0
        %506 = vmatprep.subr.mxu0 0.0
        %507 = vmatpush1.msra.mxu0 0.0
        %508 = vmatprep.subr.mxu0 0.0
        %509 = vmatpush1.msra.mxu0 0.0
        %510 = vmatprep.subr.mxu0 0.0
        %511 = vmatpush1.msra.mxu0 0.0
        %512 = vmatprep.subr.mxu0 0.0
        %513 = vmatpush1.msra.mxu0 0.0
        %514 = vmatprep.subr.mxu0 0.0
        %515 = vmatpush1.msra.mxu0 0.0
        %516 = vmatprep.subr.mxu0 0.0
        %517 = vmatpush1.msra.mxu0 0.0
        %518 = vmatprep.subr.mxu0 0.0
        %519 = vmatpush1.msra.mxu0 0.0
        %520 = vmatprep.subr.mxu0 0.0
        %521 = vmatpush1.msra.mxu0 0.0
        %522 = vmatprep.subr.mxu0 0.0
        %523 = vmatpush1.msra.mxu0 0.0
        %524 = vmatprep.subr.mxu0 0.0
        %525 = vmatpush1.msra.mxu0 0.0
        %526 = vmatprep.subr.mxu0 0.0
        %527 = vmatpush1.msra.mxu0 0.0
        %528 = vmatprep.subr.mxu0 0.0
        %529 = vmatpush1.msra.mxu0 0.0
        %530 = vmatprep.subr.mxu0 0.0
        %531 = vmatpush1.msra.mxu0 0.0
        %532 = vmatprep.subr.mxu0 0.0
        %533 = vmatpush1.msra.mxu0 0.0
        %534 = vmatprep.subr.mxu0 0.0
        %535 = vmatpush1.msra.mxu0 0.0
        %536 = vmatprep.subr.mxu0 0.0
        %537 = vmatpush1.msra.mxu0 0.0
        %538 = vmatprep.subr.mxu0 0.0
        %539 = vmatpush1.msra.mxu0 0.0
        %540 = vmatprep.subr.mxu0 0.0
        %541 = vmatpush1.msra.mxu0 0.0
        %542 = vmatprep.mubr.f32.mxu0 0.0
        %543 = vmatmul.mubr.f32.gmra.mrb[0].mxu0 %v473
        %v544 = vpop.f32.mrb[0].mxu0
        %v545 = vadd.f32 0.0, %v544
        %v546 = vpop.f32.mrb[0].mxu0
        %547 = vmatprep.mubr.f32.mxu0 0.0
        %548 = vmatmul.mubr.f32.gmra.mrb[0].mxu0 %v476
        %v549 = vpop.f32.mrb[0].mxu0
        %v550 = vadd.f32 0.0, %v549
        %v551 = vpop.f32.mrb[0].mxu0
        %552 = vdwg.mxu0
        %vm553 = vcmask 64512
        %v554 = vsel %vm553, %v545, 0.0
        %555 = vadd.xlane.f32.xlu0 %v554
        %v556 = vpop.xlane.xlu0 %555
        %v557 = vsel %vm553, %v550, 0.0
        %558 = vadd.xlane.f32.xlu0 %v557
        %v559 = vpop.xlane.xlu0 %558
        %v560 = vmul.f32 %v423, %v423
        %v561 = vmul.f32 %v424, %v424
        %v562 = vmul.f32 %v425, %v425
        %v563 = vmul.f32 %v426, %v426
        %564 = vmatprep.subr.mxu0 0.0
        %565 = vmatpush1.msra.mxu0 %v560
        %566 = vmatprep.subr.mxu0 0.0
        %567 = vmatpush1.msra.mxu0 %v561
        %568 = vmatprep.subr.mxu0 0.0
        %569 = vmatpush1.msra.mxu0 %v562
        %570 = vmatprep.subr.mxu0 0.0
        %571 = vmatpush1.msra.mxu0 %v563
        %572 = vmatprep.subr.mxu0 0.0
        %573 = vmatpush1.msra.mxu0 0.0
        %574 = vmatprep.subr.mxu0 0.0
        %575 = vmatpush1.msra.mxu0 0.0
        %576 = vmatprep.subr.mxu0 0.0
        %577 = vmatpush1.msra.mxu0 0.0
        %578 = vmatprep.subr.mxu0 0.0
        %579 = vmatpush1.msra.mxu0 0.0
        %580 = vmatprep.subr.mxu0 0.0
        %581 = vmatpush1.msra.mxu0 0.0
        %582 = vmatprep.subr.mxu0 0.0
        %583 = vmatpush1.msra.mxu0 0.0
        %584 = vmatprep.subr.mxu0 0.0
        %585 = vmatpush1.msra.mxu0 0.0
        %586 = vmatprep.subr.mxu0 0.0
        %587 = vmatpush1.msra.mxu0 0.0
        %588 = vmatprep.subr.mxu0 0.0
        %589 = vmatpush1.msra.mxu0 0.0
        %590 = vmatprep.subr.mxu0 0.0
        %591 = vmatpush1.msra.mxu0 0.0
        %592 = vmatprep.subr.mxu0 0.0
        %593 = vmatpush1.msra.mxu0 0.0
        %594 = vmatprep.subr.mxu0 0.0
        %595 = vmatpush1.msra.mxu0 0.0
        %596 = vmatprep.subr.mxu0 0.0
        %597 = vmatpush1.msra.mxu0 0.0
        %598 = vmatprep.subr.mxu0 0.0
        %599 = vmatpush1.msra.mxu0 0.0
        %600 = vmatprep.subr.mxu0 0.0
        %601 = vmatpush1.msra.mxu0 0.0
        %602 = vmatprep.subr.mxu0 0.0
        %603 = vmatpush1.msra.mxu0 0.0
        %604 = vmatprep.subr.mxu0 0.0
        %605 = vmatpush1.msra.mxu0 0.0
        %606 = vmatprep.subr.mxu0 0.0
        %607 = vmatpush1.msra.mxu0 0.0
        %608 = vmatprep.subr.mxu0 0.0
        %609 = vmatpush1.msra.mxu0 0.0
        %610 = vmatprep.subr.mxu0 0.0
        %611 = vmatpush1.msra.mxu0 0.0
        %612 = vmatprep.subr.mxu0 0.0
        %613 = vmatpush1.msra.mxu0 0.0
        %614 = vmatprep.subr.mxu0 0.0
        %615 = vmatpush1.msra.mxu0 0.0
        %616 = vmatprep.subr.mxu0 0.0
        %617 = vmatpush1.msra.mxu0 0.0
        %618 = vmatprep.subr.mxu0 0.0
        %619 = vmatpush1.msra.mxu0 0.0
        %620 = vmatprep.subr.mxu0 0.0
        %621 = vmatpush1.msra.mxu0 0.0
        %622 = vmatprep.subr.mxu0 0.0
        %623 = vmatpush1.msra.mxu0 0.0
        %624 = vmatprep.subr.mxu0 0.0
        %625 = vmatpush1.msra.mxu0 0.0
        %626 = vmatprep.subr.mxu0 0.0
        %627 = vmatpush1.msra.mxu0 0.0
        %628 = vmatprep.mubr.f32.mxu0 0.0
        %629 = vmatmul.mubr.f32.gmra.mrb[0].mxu0 %v473
        %v630 = vpop.f32.mrb[0].mxu0
        %v631 = vadd.f32 0.0, %v630
        %v632 = vpop.f32.mrb[0].mxu0
        %633 = vmatprep.mubr.f32.mxu0 0.0
        %634 = vmatmul.mubr.f32.gmra.mrb[0].mxu0 %v476
        %v635 = vpop.f32.mrb[0].mxu0
        %v636 = vadd.f32 0.0, %v635
        %v637 = vpop.f32.mrb[0].mxu0
        %638 = vdwg.mxu0
        %v639 = vsel %vm553, %v631, 0.0
        %640 = vadd.xlane.f32.xlu0 %v639
        %v641 = vpop.xlane.xlu0 %640
        %v642 = vsel %vm553, %v636, 0.0
        %643 = vadd.xlane.f32.xlu0 %v642
        %v644 = vpop.xlane.xlu0 %643
        %v645 = vmul.f32 %v556, 0.0625
        %v646 = vmul.f32 %v559, 0.0625
        %v647 = vmul.f32 %v641, 0.0625
        %v648 = vmul.f32 %v644, 0.0625
        %v649 = vmul.f32 %v645, %v645
        %v650 = vmul.f32 %v646, %v646
        %v651 = vsub.f32 %v647, %v649
        %v652 = vsub.f32 %v648, %v650
        %v653 = vmax.f32 %v651, 0.0
        %v654 = vmax.f32 %v652, 0.0
        %v655 = vadd.f32 %v653, 1e-05
        %v656 = vadd.f32 %v654, 1e-05
        %v657 = vrsqrt.pop %v655
        %v658 = vrsqrt.pop %v656
        %vm659 = vcmask 130048
        %v661 = vsel %vm659, %v467, 0
        %v664 = vsel %vm659, %v468, 0
        %v667 = vsel %vm659, %v469, 0
        %v670 = vsel %vm659, %v470, 0
        %672 = vmatprep.subr.mxu0 0.0
        %673 = vmatpush1.msra.mxu0 %v645
        %674 = vmatprep.subr.mxu0 0.0
        %675 = vmatpush1.msra.mxu0 %v646
        %676 = vmatprep.subr.mxu0 0.0
        %677 = vmatpush1.msra.mxu0 0.0
        %678 = vmatprep.subr.mxu0 0.0
        %679 = vmatpush1.msra.mxu0 0.0
        %680 = vmatprep.subr.mxu0 0.0
        %681 = vmatpush1.msra.mxu0 0.0
        %682 = vmatprep.subr.mxu0 0.0
        %683 = vmatpush1.msra.mxu0 0.0
        %684 = vmatprep.subr.mxu0 0.0
        %685 = vmatpush1.msra.mxu0 0.0
        %686 = vmatprep.subr.mxu0 0.0
        %687 = vmatpush1.msra.mxu0 0.0
        %688 = vmatprep.subr.mxu0 0.0
        %689 = vmatpush1.msra.mxu0 0.0
        %690 = vmatprep.subr.mxu0 0.0
        %691 = vmatpush1.msra.mxu0 0.0
        %692 = vmatprep.subr.mxu0 0.0
        %693 = vmatpush1.msra.mxu0 0.0
        %694 = vmatprep.subr.mxu0 0.0
        %695 = vmatpush1.msra.mxu0 0.0
        %696 = vmatprep.subr.mxu0 0.0
        %697 = vmatpush1.msra.mxu0 0.0
        %698 = vmatprep.subr.mxu0 0.0
        %699 = vmatpush1.msra.mxu0 0.0
        %700 = vmatprep.subr.mxu0 0.0
        %701 = vmatpush1.msra.mxu0 0.0
        %702 = vmatprep.subr.mxu0 0.0
        %703 = vmatpush1.msra.mxu0 0.0
        %704 = vmatprep.subr.mxu0 0.0
        %705 = vmatpush1.msra.mxu0 0.0
        %706 = vmatprep.subr.mxu0 0.0
        %707 = vmatpush1.msra.mxu0 0.0
        %708 = vmatprep.subr.mxu0 0.0
        %709 = vmatpush1.msra.mxu0 0.0
        %710 = vmatprep.subr.mxu0 0.0
        %711 = vmatpush1.msra.mxu0 0.0
        %712 = vmatprep.subr.mxu0 0.0
        %713 = vmatpush1.msra.mxu0 0.0
        %714 = vmatprep.subr.mxu0 0.0
        %715 = vmatpush1.msra.mxu0 0.0
        %716 = vmatprep.subr.mxu0 0.0
        %717 = vmatpush1.msra.mxu0 0.0
        %718 = vmatprep.subr.mxu0 0.0
        %719 = vmatpush1.msra.mxu0 0.0
        %720 = vmatprep.subr.mxu0 0.0
        %721 = vmatpush1.msra.mxu0 0.0
        %722 = vmatprep.subr.mxu0 0.0
        %723 = vmatpush1.msra.mxu0 0.0
        %724 = vmatprep.subr.mxu0 0.0
        %725 = vmatpush1.msra.mxu0 0.0
        %726 = vmatprep.subr.mxu0 0.0
        %727 = vmatpush1.msra.mxu0 0.0
        %728 = vmatprep.subr.mxu0 0.0
        %729 = vmatpush1.msra.mxu0 0.0
        %730 = vmatprep.subr.mxu0 0.0
        %731 = vmatpush1.msra.mxu0 0.0
        %732 = vmatprep.subr.mxu0 0.0
        %733 = vmatpush1.msra.mxu0 0.0
        %734 = vmatprep.subr.mxu0 0.0
        %735 = vmatpush1.msra.mxu0 0.0
        %736 = vmatprep.mubr.f32.mxu0 0.0
        %737 = vmatmul.mubr.f32.gmra.mrb[0].mxu0 %v661
        %v738 = vpop.f32.mrb[0].mxu0
        %v739 = vadd.f32 0.0, %v738
        %v740 = vpop.f32.mrb[0].mxu0
        %741 = vmatprep.mubr.f32.mxu0 0.0
        %742 = vmatmul.mubr.f32.gmra.mrb[0].mxu0 %v664
        %v743 = vpop.f32.mrb[0].mxu0
        %v744 = vadd.f32 0.0, %v743
        %v745 = vpop.f32.mrb[0].mxu0
        %746 = vmatprep.mubr.f32.mxu0 0.0
        %747 = vmatmul.mubr.f32.gmra.mrb[0].mxu0 %v667
        %v748 = vpop.f32.mrb[0].mxu0
        %v749 = vadd.f32 0.0, %v748
        %v750 = vpop.f32.mrb[0].mxu0
        %751 = vmatprep.mubr.f32.mxu0 0.0
        %752 = vmatmul.mubr.f32.gmra.mrb[0].mxu0 %v670
        %v753 = vpop.f32.mrb[0].mxu0
        %v754 = vadd.f32 0.0, %v753
        %v755 = vpop.f32.mrb[0].mxu0
        %756 = vdwg.mxu0
        %757 = vmatprep.subr.mxu0 0.0
        %758 = vmatpush1.msra.mxu0 %v657
        %759 = vmatprep.subr.mxu0 0.0
        %760 = vmatpush1.msra.mxu0 %v658
        %761 = vmatprep.subr.mxu0 0.0
        %762 = vmatpush1.msra.mxu0 0.0
        %763 = vmatprep.subr.mxu0 0.0
        %764 = vmatpush1.msra.mxu0 0.0
        %765 = vmatprep.subr.mxu0 0.0
        %766 = vmatpush1.msra.mxu0 0.0
        %767 = vmatprep.subr.mxu0 0.0
        %768 = vmatpush1.msra.mxu0 0.0
        %769 = vmatprep.subr.mxu0 0.0
        %770 = vmatpush1.msra.mxu0 0.0
        %771 = vmatprep.subr.mxu0 0.0
        %772 = vmatpush1.msra.mxu0 0.0
        %773 = vmatprep.subr.mxu0 0.0
        %774 = vmatpush1.msra.mxu0 0.0
        %775 = vmatprep.subr.mxu0 0.0
        %776 = vmatpush1.msra.mxu0 0.0
        %777 = vmatprep.subr.mxu0 0.0
        %778 = vmatpush1.msra.mxu0 0.0
        %779 = vmatprep.subr.mxu0 0.0
        %780 = vmatpush1.msra.mxu0 0.0
        %781 = vmatprep.subr.mxu0 0.0
        %782 = vmatpush1.msra.mxu0 0.0
        %783 = vmatprep.subr.mxu0 0.0
        %784 = vmatpush1.msra.mxu0 0.0
        %785 = vmatprep.subr.mxu0 0.0
        %786 = vmatpush1.msra.mxu0 0.0
        %787 = vmatprep.subr.mxu0 0.0
        %788 = vmatpush1.msra.mxu0 0.0
        %789 = vmatprep.subr.mxu0 0.0
        %790 = vmatpush1.msra.mxu0 0.0
        %791 = vmatprep.subr.mxu0 0.0
        %792 = vmatpush1.msra.mxu0 0.0
        %793 = vmatprep.subr.mxu0 0.0
        %794 = vmatpush1.msra.mxu0 0.0
        %795 = vmatprep.subr.mxu0 0.0
        %796 = vmatpush1.msra.mxu0 0.0
        %797 = vmatprep.subr.mxu0 0.0
        %798 = vmatpush1.msra.mxu0 0.0
        %799 = vmatprep.subr.mxu0 0.0
        %800 = vmatpush1.msra.mxu0 0.0
        %801 = vmatprep.subr.mxu0 0.0
        %802 = vmatpush1.msra.mxu0 0.0
        %803 = vmatprep.subr.mxu0 0.0
        %804 = vmatpush1.msra.mxu0 0.0
        %805 = vmatprep.subr.mxu0 0.0
        %806 = vmatpush1.msra.mxu0 0.0
        %807 = vmatprep.subr.mxu0 0.0
        %808 = vmatpush1.msra.mxu0 0.0
        %809 = vmatprep.subr.mxu0 0.0
        %810 = vmatpush1.msra.mxu0 0.0
        %811 = vmatprep.subr.mxu0 0.0
        %812 = vmatpush1.msra.mxu0 0.0
        %813 = vmatprep.subr.mxu0 0.0
        %814 = vmatpush1.msra.mxu0 0.0
        %815 = vmatprep.subr.mxu0 0.0
        %816 = vmatpush1.msra.mxu0 0.0
        %817 = vmatprep.subr.mxu0 0.0
        %818 = vmatpush1.msra.mxu0 0.0
        %819 = vmatprep.subr.mxu0 0.0
        %820 = vmatpush1.msra.mxu0 0.0
        %821 = vmatprep.mubr.f32.mxu0 0.0
        %822 = vmatmul.mubr.f32.gmra.mrb[0].mxu0 %v661
        %v823 = vpop.f32.mrb[0].mxu0
        %v824 = vadd.f32 0.0, %v823
        %v825 = vpop.f32.mrb[0].mxu0
        %826 = vmatprep.mubr.f32.mxu0 0.0
        %827 = vmatmul.mubr.f32.gmra.mrb[0].mxu0 %v664
        %v828 = vpop.f32.mrb[0].mxu0
        %v829 = vadd.f32 0.0, %v828
        %v830 = vpop.f32.mrb[0].mxu0
        %831 = vmatprep.mubr.f32.mxu0 0.0
        %832 = vmatmul.mubr.f32.gmra.mrb[0].mxu0 %v667
        %v833 = vpop.f32.mrb[0].mxu0
        %v834 = vadd.f32 0.0, %v833
        %v835 = vpop.f32.mrb[0].mxu0
        %836 = vmatprep.mubr.f32.mxu0 0.0
        %837 = vmatmul.mubr.f32.gmra.mrb[0].mxu0 %v670
        %v838 = vpop.f32.mrb[0].mxu0
        %v839 = vadd.f32 0.0, %v838
        %v840 = vpop.f32.mrb[0].mxu0
        %841 = vdwg.mxu0
        %v842 = vsub.f32 %v423, %v739
        %v843 = vsub.f32 %v424, %v744
        %v844 = vsub.f32 %v425, %v749
        %v845 = vsub.f32 %v426, %v754
        %v846 = vmul.f32 %v842, %v824
        %v847 = vmul.f32 %v843, %v829
        %v848 = vmul.f32 %v844, %v834
        %v849 = vmul.f32 %v845, %v839
        %v850 = vld [vmem:[%s2] sm:$0xff]
        %v851 = vld [vmem:[%s2 + $0x8] sm:$0xff]
        %v852 = vld [vmem:[%s2 + $0x10] sm:$0xff]
        %v853 = vld [vmem:[%s2 + $0x18] sm:$0xff]
        %855 = vset.pattern.permute.xlu0 0
        %856 = vperm.xlu0 %855, %v850
        %v857 = vpop.permute.xlu0 %856
        %860 = vset.pattern.permute.xlu0 0
        %861 = vperm.xlu0 %860, %v851
        %v862 = vpop.permute.xlu0 %861
        %865 = vset.pattern.permute.xlu0 0
        %866 = vperm.xlu0 %865, %v852
        %v867 = vpop.permute.xlu0 %866
        %870 = vset.pattern.permute.xlu0 0
        %871 = vperm.xlu0 %870, %v853
        %v872 = vpop.permute.xlu0 %871
        %v874 = vmul.f32 %v846, %v857
        %v875 = vmul.f32 %v847, %v862
        %v876 = vmul.f32 %v848, %v867
        %v877 = vmul.f32 %v849, %v872
        %v878 = vld [vmem:[%s3] sm:$0xff]
        %v879 = vld [vmem:[%s3 + $0x8] sm:$0xff]
        %v880 = vld [vmem:[%s3 + $0x10] sm:$0xff]
        %v881 = vld [vmem:[%s3 + $0x18] sm:$0xff]
        %883 = vset.pattern.permute.xlu0 0
        %884 = vperm.xlu0 %883, %v878
        %v885 = vpop.permute.xlu0 %884
        %888 = vset.pattern.permute.xlu0 0
        %889 = vperm.xlu0 %888, %v879
        %v890 = vpop.permute.xlu0 %889
        %893 = vset.pattern.permute.xlu0 0
        %894 = vperm.xlu0 %893, %v880
        %v895 = vpop.permute.xlu0 %894
        %898 = vset.pattern.permute.xlu0 0
        %899 = vperm.xlu0 %898, %v881
        %v900 = vpop.permute.xlu0 %899
        %v902 = vadd.f32 %v874, %v885
        %v903 = vadd.f32 %v875, %v890
        %v904 = vadd.f32 %v876, %v895
        %v905 = vadd.f32 %v877, %v900
        %906 = vst.msk [vmem:[%s251] sm:$0xff] %vm553, %v902
        %907 = vst.msk [vmem:[%s251 + $0x8] sm:$0xff] %vm553, %v903
        %908 = vst.msk [vmem:[%s251 + $0x10] sm:$0xff] %vm553, %v904
        %909 = vst.msk [vmem:[%s251 + $0x18] sm:$0xff] %vm553, %v905
      $region44: #{aspp_image_pooler.2} parent=35 // pred_fallthru
        _
      %p910 = scmp.lt.s32.totalorder %s20, 1
      %s911 = scalar_select %p910, %s20, 1
      %s912 = smul.addr %s911, 4
      %s913 = smul.addr %s912, 8
      %s914 = scalar_lea.vmem %s4, %s913
      // Predicated region
      $region45: #{aspp_image_pooler.2} parent=35 // pred_check
        %p915 = pneg %p145
      $region46: #{aspp_image_pooler.2} parent=35 // pred_check_branch
        %917 = sbr.rel (%p915) target = $region48
      $region47: #{aspp_image_pooler.2} parent=35 // pred_region
        _
      $region48: #{aspp_image_pooler.2} parent=35 // pred_fallthru
        _
    $region36: #{aspp_image_pooler.2} parent=5 // pred_fallthru
      _
    %p918 = scmp.le.s32.totalorder 2, %s10
    // Predicated region
    $region49: #{aspp_image_pooler.2} parent=5 // pred_check
      %p919 = pneg %p918
    $region50: #{aspp_image_pooler.2} parent=5 // pred_check_branch
      %921 = sbr.rel (%p919) target = $region52
    $region51: #{aspp_image_pooler.2} parent=5 // pred_region
      %s922 = ssub.s32 %s10, 2
      // Predicated region
      $region53: #{aspp_image_pooler.2} parent=51 // pred_check
        %p923 = pneg %p151
      $region54: #{aspp_image_pooler.2} parent=51 // pred_check_branch
        %925 = sbr.rel (%p923) target = $region56
      $region55: #{aspp_image_pooler.2} parent=51 // pred_region
        %p926 = scmp.lt.s32.totalorder %s23, 1
        %s927 = scalar_select %p926, %s23, 1
        %s928 = smul.addr %s927, 4
        %s929 = smul.addr %s928, 8
        %s930 = scalar_lea.vmem %s4, %s929
      $region56: #{aspp_image_pooler.2} parent=51 // pred_fallthru
        _
    $region52: #{aspp_image_pooler.2} parent=5 // pred_fallthru
      _
  $region6: #{aspp_image_pooler.2} parent=0 // loop_footer
    %s14 = sadd.s32 1, %s10
  $region7: #{aspp_image_pooler.2} parent=0 // loop_footer_branch
    %9 = sbr.rel target = $region3
  $region8: #{aspp_image_pooler.2} parent=0 // loop_exit
    _

</llo_original>
